<compile_context>
chip_gen: v7x
topology: tpu7x:2x2x1
jax: 0.10.0
libtpu: 0.0.40
codegen_flags: <defaults>
</compile_context>

<pallas_src>
import jax
import jax.numpy as jnp
from jax import lax
from jax.experimental import pallas as pl
from jax.experimental.pallas import tpu as pltpu


H = W = 64          # spatial size implied by the module (view(..., 4, 64, 64))
P = H * W           # 4096 pixels per frame -> lane axis
CIN = 4
COUT = 64
CHUNK = 512                      # lane-axis chunk: (COUT, CHUNK) f32 = 128 KB
FB_CAP = 16                      # frames per grid step (Fb=16 dbl-buffered ~34 MB)
VMEM_LIMIT_BYTES = 48 * 1024 * 1024   # < v7x 64 MiB/TC, > v5e 16 MiB scoped default


def _conv1x1_tanh_kernel(x_ref, w_ref, b_ref, o_ref):
    # x_ref: (Fb, CIN, P) native dtype   w_ref: (COUT, CIN) f32
    # b_ref: (COUT, 1) f32               o_ref: (Fb, COUT, P)
    w = w_ref[...]                                          # (COUT, CIN)
    # Hoist the bias lane-broadcast once (JAX does not CSE broadcast_in_dim,
    # so doing it inside the frame loop would re-emit it per frame).
    b_bcast = jnp.broadcast_to(b_ref[...], (COUT, CHUNK))   # (COUT, CHUNK)
    fb = x_ref.shape[0]
    n_chunks = P // CHUNK                                   # static (== 8)

    def frame_body(f, carry):
        # Static chunk loop: each (COUT, CHUNK) intermediate stays small, so
        # MXU pops, EUP tanh and vst interleave in the same bundles and vreg
        # live ranges stay bounded even for Fb up to 16.
        for c in range(n_chunks):
            c0 = pl.multiple_of(c * CHUNK, CHUNK)
            xc = x_ref[f, :, pl.ds(c0, CHUNK)].astype(jnp.float32)   # (CIN, CHUNK)
            y = jnp.dot(w, xc, preferred_element_type=jnp.float32)   # (COUT, CHUNK)
            o_ref[f, :, pl.ds(c0, CHUNK)] = jnp.tanh(y + b_bcast).astype(o_ref.dtype)
        return carry

    lax.fori_loop(0, fb, frame_body, 0)


def _choose_fb(F, cap=FB_CAP):
    """Largest divisor of F that is <= cap (each grid step then moves up to
    ~cap MB of output).  If that would put all of F in one step but splitting
    still leaves >= 4 frames (>= ~4 MB output) per step, split in two so
    v7x's two TensorCores both get work and the pipeline has >= 2 stages."""
    c = min(cap, F)
    fb = max(d for d in range(1, c + 1) if F % d == 0)
    if fb == F and F % 2 == 0 and F // 2 >= 4:
        fb = F // 2
    return fb
    # TODO(synk): for large prime F this degrades to fb=1 (1 MB steps); a
    # pl.cdiv grid with a masked ragged last block would fix that corner case.


def augment_frame_tanh(x_fcp, w, bias, out_dtype=jnp.float32):
    """x_fcp: (F, CIN, P) any float dtype; w: (COUT, CIN) f32;
    bias: (COUT, 1) f32  ->  (F, COUT, P) out_dtype."""
    F, cin, p = x_fcp.shape
    assert cin == CIN and p == P
    fb = _choose_fb(F)
    grid = (F // fb,)
    return pl.pallas_call(
        _conv1x1_tanh_kernel,
        out_shape=jax.ShapeDtypeStruct((F, COUT, P), out_dtype),
        grid_spec=pltpu.PrefetchScalarGridSpec(
            num_scalar_prefetch=0,
            grid=grid,
            in_specs=[
                pl.BlockSpec((fb, CIN, P), lambda i: (i, 0, 0)),
                pl.BlockSpec((COUT, CIN), lambda i: (0, 0)),
                pl.BlockSpec((COUT, 1), lambda i: (0, 0)),
            ],
            out_specs=pl.BlockSpec((fb, COUT, P), lambda i: (i, 0, 0)),
        ),
        compiler_params=pltpu.CompilerParams(
            dimension_semantics=("parallel",),
            vmem_limit_bytes=VMEM_LIMIT_BYTES,
        ),
    )(x_fcp, w, bias)


class FramesSDFFusionPallas:
    """JAX/Pallas port of Frames_SDF_Fusion (deterministic synthetic params)."""

    def __init__(self, number_of_couples, key=jax.random.PRNGKey(42)):
        self.number_of_couples = number_of_couples
        k1, k2, k3, _ = jax.random.split(key, 4)
        # Conv2d(4 -> 64, kernel 1): weight (COUT, CIN, 1, 1), bias (COUT,)
        self.aug_w = jax.random.normal(k1, (COUT, CIN, 1, 1), jnp.float32) * 0.1
        self.aug_b = jax.random.normal(k2, (COUT,), jnp.float32) * 0.1
        # Declared-but-unused parameters (kept for parity with __init__):
        # Conv3d(1 -> 1, kernel (8,16,16)): weight (1, 1, 8, 16, 16), bias (1,)
        self.temporal_w = jax.random.normal(k3, (1, 1, 8, 16, 16), jnp.float32) * 0.01
        self.temporal_b = jnp.zeros((1,), jnp.float32)
        self.pixel_weights = jnp.zeros((64, 64, 64), jnp.float32)

    def __call__(self, frames, out_dtype=jnp.float32):
        # frames: (B, number_of_couples * 4, 64, 64)  (NCHW-style stack of couples)
        B = frames.shape[0]
        N = self.number_of_couples
        # Zero-copy reshape to the channel-major pixel slab the kernel wants.
        # The per-block cast to f32 happens inside the kernel (no extra HBM pass).
        x = frames.reshape(B * N, CIN, P)                           # (F, CIN, P)
        w = self.aug_w[:, :, 0, 0]                                  # (COUT, CIN)
        bias = self.aug_b.reshape(COUT, 1)                          # (COUT, 1)
        y = augment_frame_tanh(x, w, bias, out_dtype=out_dtype)     # (F, COUT, P)
        # Zero-copy reshape back to PyTorch convention (B, N, COUT, H, W).
        return y.reshape(B, N, COUT, H, W)
        # TODO(synk): the reference forward() returns None and never uses
        # temporal_convolution / pixel_weights; we return the tanh(conv1x1) result.


def _reference(frames, model):
    """Pure-JAX reference for the same interpretation of forward()."""
    B = frames.shape[0]
    N = model.number_of_couples
    x = frames.reshape(B * N, CIN, H, W).astype(jnp.float32)
    w = model.aug_w[:, :, 0, 0]                                     # (COUT, CIN)
    y = jnp.einsum("oc,bchw->bohw", w, x,
                   preferred_element_type=jnp.float32)
    y = y + model.aug_b[None, :, None, None]
    y = jnp.tanh(y)
    return y.reshape(B, N, COUT, H, W)


if __name__ == "__main__":
    key = jax.random.PRNGKey(0)

    # Primary small case: B=2, number_of_couples=2 -> F=4 (single grid step).
    B, N = 2, 2
    k1, k2 = jax.random.split(key)
    frames = jax.random.normal(k1, (B, N * CIN, H, W), jnp.float32)
    model = FramesSDFFusionPallas(number_of_couples=N)
    out = jax.block_until_ready(model(frames))
    ref = _reference(frames, model)
    assert out.shape == (B, N, COUT, H, W), out.shape
    err = float(jnp.max(jnp.abs(out - ref)))
    assert err < 1e-5, f"max abs err {err}"

    # Second case exercising the multi-step grid path: F = B*N = 8 -> fb=4, 2 steps.
    B2, N2 = 2, 4
    frames2 = jax.random.normal(k2, (B2, N2 * CIN, H, W), jnp.float32)
    model2 = FramesSDFFusionPallas(number_of_couples=N2)
    out2 = jax.block_until_ready(model2(frames2))
    ref2 = _reference(frames2, model2)
    assert out2.shape == (B2, N2, COUT, H, W), out2.shape
    err2 = float(jnp.max(jnp.abs(out2 - ref2)))
    assert err2 < 1e-5, f"max abs err {err2}"

    print("KERNEL_OK")
</pallas_src>

<mosaic_0001>
module attributes {stable_mosaic.version = 11 : i64} {
  func.func @_conv1x1_tanh_kernel(%arg0: i32, %arg1: memref<4x4x4096xf32, #tpu.memory_space<vmem>>, %arg2: memref<64x4xf32, #tpu.memory_space<vmem>>, %arg3: memref<64x1xf32, #tpu.memory_space<vmem>>, %arg4: memref<4x64x4096xf32, #tpu.memory_space<vmem>>) attributes {dimension_semantics = [#tpu.dimension_semantics<parallel>], iteration_bounds = array<i64: 1>, scalar_prefetch = 0 : i64, scratch_operands = 0 : i64, tpu.core_type = #tpu.core_type<tc>, window_params = [{transform_indices = @transform_0, window_bounds = array<i64: 4, 4, 4096>}, {pipeline_mode = #tpu.pipeline_mode<synchronous>, transform_indices = @transform_1, window_bounds = array<i64: 64, 4>}, {pipeline_mode = #tpu.pipeline_mode<synchronous>, transform_indices = @transform_2, window_bounds = array<i64: 64, 1>}, {transform_indices = @transform_3, window_bounds = array<i64: 4, 64, 4096>}]} {
    %c0 = arith.constant 0 : index
    %c0_0 = arith.constant 0 : index
    %0 = vector.load %arg2[%c0, %c0_0] : memref<64x4xf32, #tpu.memory_space<vmem>>, vector<64x4xf32>
    %c0_1 = arith.constant 0 : index
    %c0_2 = arith.constant 0 : index
    %1 = vector.load %arg3[%c0_1, %c0_2] : memref<64x1xf32, #tpu.memory_space<vmem>>, vector<64x1xf32>
    %2 = vector.shape_cast %1 : vector<64x1xf32> to vector<64x1xf32>
    %3 = vector.broadcast %2 : vector<64x1xf32> to vector<64x512xf32>
    %c0_i32 = arith.constant 0 : i32
    %c4_i32 = arith.constant 4 : i32
    %4 = arith.addi %c0_i32, %c4_i32 : i32
    %c1_i32 = arith.constant 1 : i32
    scf.for %arg5 = %c0_i32 to %4 step %c1_i32  : i32 {
      %c0_i32_4 = arith.constant 0 : i32
      %5 = tpu.assume_multiple %c0_i32_4, 512 : i32
      %6 = arith.index_cast %arg5 : i32 to index
      %c0_5 = arith.constant 0 : index
      %7 = arith.index_cast %5 : i32 to index
      %8 = vector.load %arg1[%6, %c0_5, %7] : memref<4x4x4096xf32, #tpu.memory_space<vmem>>, vector<1x4x512xf32>
      %9 = vector.shape_cast %8 : vector<1x4x512xf32> to vector<4x512xf32>
      %cst = arith.constant dense<0.000000e+00> : vector<64x512xf32>
      %10 = tpu.matmul %0, %9, %cst {dimension_numbers = #tpu.dot_dimension_numbers<[1], [0], [0], [1], [0, 0, 1, 1], [], []>} : vector<64x4xf32>, vector<4x512xf32>, vector<64x512xf32> -> vector<64x512xf32>
      %11 = arith.addf %10, %3 : vector<64x512xf32>
      %12 = math.tanh %11 : vector<64x512xf32>
      %13 = arith.index_cast %arg5 : i32 to index
      %c0_6 = arith.constant 0 : index
      %14 = arith.index_cast %5 : i32 to index
      %15 = vector.load %arg4[%13, %c0_6, %14] : memref<4x64x4096xf32, #tpu.memory_space<vmem>>, vector<1x64x512xf32>
      %16 = vector.shape_cast %15 : vector<1x64x512xf32> to vector<64x512xf32>
      %17 = vector.shape_cast %12 : vector<64x512xf32> to vector<1x64x512xf32>
      tpu.vector_store %arg4[%13, %c0_6, %14], %17 {strides = array<i32>} : memref<4x64x4096xf32, #tpu.memory_space<vmem>>, vector<1x64x512xf32>,
      %c512_i32 = arith.constant 512 : i32
      %18 = tpu.assume_multiple %c512_i32, 512 : i32
      %19 = arith.index_cast %arg5 : i32 to index
      %c0_7 = arith.constant 0 : index
      %20 = arith.index_cast %18 : i32 to index
      %21 = vector.load %arg1[%19, %c0_7, %20] : memref<4x4x4096xf32, #tpu.memory_space<vmem>>, vector<1x4x512xf32>
      %22 = vector.shape_cast %21 : vector<1x4x512xf32> to vector<4x512xf32>
      %cst_8 = arith.constant dense<0.000000e+00> : vector<64x512xf32>
      %23 = tpu.matmul %0, %22, %cst_8 {dimension_numbers = #tpu.dot_dimension_numbers<[1], [0], [0], [1], [0, 0, 1, 1], [], []>} : vector<64x4xf32>, vector<4x512xf32>, vector<64x512xf32> -> vector<64x512xf32>
      %24 = arith.addf %23, %3 : vector<64x512xf32>
      %25 = math.tanh %24 : vector<64x512xf32>
      %26 = arith.index_cast %arg5 : i32 to index
      %c0_9 = arith.constant 0 : index
      %27 = arith.index_cast %18 : i32 to index
      %28 = vector.load %arg4[%26, %c0_9, %27] : memref<4x64x4096xf32, #tpu.memory_space<vmem>>, vector<1x64x512xf32>
      %29 = vector.shape_cast %28 : vector<1x64x512xf32> to vector<64x512xf32>
      %30 = vector.shape_cast %25 : vector<64x512xf32> to vector<1x64x512xf32>
      tpu.vector_store %arg4[%26, %c0_9, %27], %30 {strides = array<i32>} : memref<4x64x4096xf32, #tpu.memory_space<vmem>>, vector<1x64x512xf32>,
      %c1024_i32 = arith.constant 1024 : i32
      %31 = tpu.assume_multiple %c1024_i32, 512 : i32
      %32 = arith.index_cast %arg5 : i32 to index
      %c0_10 = arith.constant 0 : index
      %33 = arith.index_cast %31 : i32 to index
      %34 = vector.load %arg1[%32, %c0_10, %33] : memref<4x4x4096xf32, #tpu.memory_space<vmem>>, vector<1x4x512xf32>
      %35 = vector.shape_cast %34 : vector<1x4x512xf32> to vector<4x512xf32>
      %cst_11 = arith.constant dense<0.000000e+00> : vector<64x512xf32>
      %36 = tpu.matmul %0, %35, %cst_11 {dimension_numbers = #tpu.dot_dimension_numbers<[1], [0], [0], [1], [0, 0, 1, 1], [], []>} : vector<64x4xf32>, vector<4x512xf32>, vector<64x512xf32> -> vector<64x512xf32>
      %37 = arith.addf %36, %3 : vector<64x512xf32>
      %38 = math.tanh %37 : vector<64x512xf32>
      %39 = arith.index_cast %arg5 : i32 to index
      %c0_12 = arith.constant 0 : index
      %40 = arith.index_cast %31 : i32 to index
      %41 = vector.load %arg4[%39, %c0_12, %40] : memref<4x64x4096xf32, #tpu.memory_space<vmem>>, vector<1x64x512xf32>
      %42 = vector.shape_cast %41 : vector<1x64x512xf32> to vector<64x512xf32>
      %43 = vector.shape_cast %38 : vector<64x512xf32> to vector<1x64x512xf32>
      tpu.vector_store %arg4[%39, %c0_12, %40], %43 {strides = array<i32>} : memref<4x64x4096xf32, #tpu.memory_space<vmem>>, vector<1x64x512xf32>,
      %c1536_i32 = arith.constant 1536 : i32
      %44 = tpu.assume_multiple %c1536_i32, 512 : i32
      %45 = arith.index_cast %arg5 : i32 to index
      %c0_13 = arith.constant 0 : index
      %46 = arith.index_cast %44 : i32 to index
      %47 = vector.load %arg1[%45, %c0_13, %46] : memref<4x4x4096xf32, #tpu.memory_space<vmem>>, vector<1x4x512xf32>
      %48 = vector.shape_cast %47 : vector<1x4x512xf32> to vector<4x512xf32>
      %cst_14 = arith.constant dense<0.000000e+00> : vector<64x512xf32>
      %49 = tpu.matmul %0, %48, %cst_14 {dimension_numbers = #tpu.dot_dimension_numbers<[1], [0], [0], [1], [0, 0, 1, 1], [], []>} : vector<64x4xf32>, vector<4x512xf32>, vector<64x512xf32> -> vector<64x512xf32>
      %50 = arith.addf %49, %3 : vector<64x512xf32>
      %51 = math.tanh %50 : vector<64x512xf32>
      %52 = arith.index_cast %arg5 : i32 to index
      %c0_15 = arith.constant 0 : index
      %53 = arith.index_cast %44 : i32 to index
      %54 = vector.load %arg4[%52, %c0_15, %53] : memref<4x64x4096xf32, #tpu.memory_space<vmem>>, vector<1x64x512xf32>
      %55 = vector.shape_cast %54 : vector<1x64x512xf32> to vector<64x512xf32>
      %56 = vector.shape_cast %51 : vector<64x512xf32> to vector<1x64x512xf32>
      tpu.vector_store %arg4[%52, %c0_15, %53], %56 {strides = array<i32>} : memref<4x64x4096xf32, #tpu.memory_space<vmem>>, vector<1x64x512xf32>,
      %c2048_i32 = arith.constant 2048 : i32
      %57 = tpu.assume_multiple %c2048_i32, 512 : i32
      %58 = arith.index_cast %arg5 : i32 to index
      %c0_16 = arith.constant 0 : index
      %59 = arith.index_cast %57 : i32 to index
      %60 = vector.load %arg1[%58, %c0_16, %59] : memref<4x4x4096xf32, #tpu.memory_space<vmem>>, vector<1x4x512xf32>
      %61 = vector.shape_cast %60 : vector<1x4x512xf32> to vector<4x512xf32>
      %cst_17 = arith.constant dense<0.000000e+00> : vector<64x512xf32>
      %62 = tpu.matmul %0, %61, %cst_17 {dimension_numbers = #tpu.dot_dimension_numbers<[1], [0], [0], [1], [0, 0, 1, 1], [], []>} : vector<64x4xf32>, vector<4x512xf32>, vector<64x512xf32> -> vector<64x512xf32>
      %63 = arith.addf %62, %3 : vector<64x512xf32>
      %64 = math.tanh %63 : vector<64x512xf32>
      %65 = arith.index_cast %arg5 : i32 to index
      %c0_18 = arith.constant 0 : index
      %66 = arith.index_cast %57 : i32 to index
      %67 = vector.load %arg4[%65, %c0_18, %66] : memref<4x64x4096xf32, #tpu.memory_space<vmem>>, vector<1x64x512xf32>
      %68 = vector.shape_cast %67 : vector<1x64x512xf32> to vector<64x512xf32>
      %69 = vector.shape_cast %64 : vector<64x512xf32> to vector<1x64x512xf32>
      tpu.vector_store %arg4[%65, %c0_18, %66], %69 {strides = array<i32>} : memref<4x64x4096xf32, #tpu.memory_space<vmem>>, vector<1x64x512xf32>,
      %c2560_i32 = arith.constant 2560 : i32
      %70 = tpu.assume_multiple %c2560_i32, 512 : i32
      %71 = arith.index_cast %arg5 : i32 to index
      %c0_19 = arith.constant 0 : index
      %72 = arith.index_cast %70 : i32 to index
      %73 = vector.load %arg1[%71, %c0_19, %72] : memref<4x4x4096xf32, #tpu.memory_space<vmem>>, vector<1x4x512xf32>
      %74 = vector.shape_cast %73 : vector<1x4x512xf32> to vector<4x512xf32>
      %cst_20 = arith.constant dense<0.000000e+00> : vector<64x512xf32>
      %75 = tpu.matmul %0, %74, %cst_20 {dimension_numbers = #tpu.dot_dimension_numbers<[1], [0], [0], [1], [0, 0, 1, 1], [], []>} : vector<64x4xf32>, vector<4x512xf32>, vector<64x512xf32> -> vector<64x512xf32>
      %76 = arith.addf %75, %3 : vector<64x512xf32>
      %77 = math.tanh %76 : vector<64x512xf32>
      %78 = arith.index_cast %arg5 : i32 to index
      %c0_21 = arith.constant 0 : index
      %79 = arith.index_cast %70 : i32 to index
      %80 = vector.load %arg4[%78, %c0_21, %79] : memref<4x64x4096xf32, #tpu.memory_space<vmem>>, vector<1x64x512xf32>
      %81 = vector.shape_cast %80 : vector<1x64x512xf32> to vector<64x512xf32>
      %82 = vector.shape_cast %77 : vector<64x512xf32> to vector<1x64x512xf32>
      tpu.vector_store %arg4[%78, %c0_21, %79], %82 {strides = array<i32>} : memref<4x64x4096xf32, #tpu.memory_space<vmem>>, vector<1x64x512xf32>,
      %c3072_i32 = arith.constant 3072 : i32
      %83 = tpu.assume_multiple %c3072_i32, 512 : i32
      %84 = arith.index_cast %arg5 : i32 to index
      %c0_22 = arith.constant 0 : index
      %85 = arith.index_cast %83 : i32 to index
      %86 = vector.load %arg1[%84, %c0_22, %85] : memref<4x4x4096xf32, #tpu.memory_space<vmem>>, vector<1x4x512xf32>
      %87 = vector.shape_cast %86 : vector<1x4x512xf32> to vector<4x512xf32>
      %cst_23 = arith.constant dense<0.000000e+00> : vector<64x512xf32>
      %88 = tpu.matmul %0, %87, %cst_23 {dimension_numbers = #tpu.dot_dimension_numbers<[1], [0], [0], [1], [0, 0, 1, 1], [], []>} : vector<64x4xf32>, vector<4x512xf32>, vector<64x512xf32> -> vector<64x512xf32>
      %89 = arith.addf %88, %3 : vector<64x512xf32>
      %90 = math.tanh %89 : vector<64x512xf32>
      %91 = arith.index_cast %arg5 : i32 to index
      %c0_24 = arith.constant 0 : index
      %92 = arith.index_cast %83 : i32 to index
      %93 = vector.load %arg4[%91, %c0_24, %92] : memref<4x64x4096xf32, #tpu.memory_space<vmem>>, vector<1x64x512xf32>
      %94 = vector.shape_cast %93 : vector<1x64x512xf32> to vector<64x512xf32>
      %95 = vector.shape_cast %90 : vector<64x512xf32> to vector<1x64x512xf32>
      tpu.vector_store %arg4[%91, %c0_24, %92], %95 {strides = array<i32>} : memref<4x64x4096xf32, #tpu.memory_space<vmem>>, vector<1x64x512xf32>,
      %c3584_i32 = arith.constant 3584 : i32
      %96 = tpu.assume_multiple %c3584_i32, 512 : i32
      %97 = arith.index_cast %arg5 : i32 to index
      %c0_25 = arith.constant 0 : index
      %98 = arith.index_cast %96 : i32 to index
      %99 = vector.load %arg1[%97, %c0_25, %98] : memref<4x4x4096xf32, #tpu.memory_space<vmem>>, vector<1x4x512xf32>
      %100 = vector.shape_cast %99 : vector<1x4x512xf32> to vector<4x512xf32>
      %cst_26 = arith.constant dense<0.000000e+00> : vector<64x512xf32>
      %101 = tpu.matmul %0, %100, %cst_26 {dimension_numbers = #tpu.dot_dimension_numbers<[1], [0], [0], [1], [0, 0, 1, 1], [], []>} : vector<64x4xf32>, vector<4x512xf32>, vector<64x512xf32> -> vector<64x512xf32>
      %102 = arith.addf %101, %3 : vector<64x512xf32>
      %103 = math.tanh %102 : vector<64x512xf32>
      %104 = arith.index_cast %arg5 : i32 to index
      %c0_27 = arith.constant 0 : index
      %105 = arith.index_cast %96 : i32 to index
      %106 = vector.load %arg4[%104, %c0_27, %105] : memref<4x64x4096xf32, #tpu.memory_space<vmem>>, vector<1x64x512xf32>
      %107 = vector.shape_cast %106 : vector<1x64x512xf32> to vector<64x512xf32>
      %108 = vector.shape_cast %103 : vector<64x512xf32> to vector<1x64x512xf32>
      tpu.vector_store %arg4[%104, %c0_27, %105], %108 {strides = array<i32>} : memref<4x64x4096xf32, #tpu.memory_space<vmem>>, vector<1x64x512xf32>,
    }
    %c4_i32_3 = arith.constant 4 : i32
    return
  }
  func.func @transform_0(%arg0: i32) -> (i32, i32, i32) {
    %c0_i32 = arith.constant 0 : i32
    %c0_i32_0 = arith.constant 0 : i32
    %c0_i32_1 = arith.constant 0 : i32
    return %arg0, %c0_i32, %c0_i32_0 : i32, i32, i32
  }
  func.func @transform_1(%arg0: i32) -> (i32, i32) {
    %c0_i32 = arith.constant 0 : i32
    %c0_i32_0 = arith.constant 0 : i32
    %c0_i32_1 = arith.constant 0 : i32
    return %c0_i32, %c0_i32_0 : i32, i32
  }
  func.func @transform_2(%arg0: i32) -> (i32, i32) {
    %c0_i32 = arith.constant 0 : i32
    %c0_i32_0 = arith.constant 0 : i32
    %c0_i32_1 = arith.constant 0 : i32
    return %c0_i32, %c0_i32_0 : i32, i32
  }
  func.func @transform_3(%arg0: i32) -> (i32, i32, i32) {
    %c0_i32 = arith.constant 0 : i32
    %c0_i32_0 = arith.constant 0 : i32
    %c0_i32_1 = arith.constant 0 : i32
    return %arg0, %c0_i32, %c0_i32_0 : i32, i32, i32
  }
}

</mosaic_0001>

<llo_original>
// kernel: tpu_custom_call.1
$region0: #{tpu_custom_call.1}
  #allocation0 [shape = 'u32[]', space=smem, size = 0x4, offset = 0x4, fixed_abs, tag = 'smem constant byte address 0x4 - core index']
  #allocation1 [shape = 'u32[144,128]{1,0:T(1,128)}', space=vmem, size = 0x12000, scoped, tag = 'internal scratch']
  %s0 = inlined_call_operand.hbm [shape: f32[4,4,4096], index: 0, kind: input, shape index: {}]
  %s1 = inlined_call_operand.vmem [shape: f32[64,4], index: 1, kind: input, shape index: {}]
  %s2 = inlined_call_operand.vmem [shape: f32[64,1], index: 2, kind: input, shape index: {}]
  %s3 = inlined_call_operand.hbm [shape: f32[4,64,4096], index: 3, kind: output, shape index: {}]
  %s4 = sld [smem:[#allocation0]]
  $region33: #{tpu_custom_call.1} parent=0
    _
  %s6 = ssub.s32 1, %s4
  %s7 = scalar_select 0, %s6, %s4
  $region1: #{tpu_custom_call.1} parent=0
    #allocation2 [shape = 'u8[262144]{0}', space=vmem, size = 0x40000, scoped, tag = 'input window, operand 0, single buffered']
    #allocation3 [shape = 's32[1]{0}', space=sflag, size = 0x4, scoped, tag = 'scoped memory for tpu_custom_call.1']
    #allocation4 [shape = 's32[1]{0}', space=sflag, size = 0x4, scoped, tag = 'scoped memory for tpu_custom_call.1']
    #allocation5 [shape = 'u8[4194304]{0}', space=vmem, size = 0x400000, scoped, tag = 'output window, operand 0, single buffered']
    %8 = vsyncpa [#allocation3], 0
    %9 = vsyncpa [#allocation4], 0
    // Predicated region
    $region2: #{tpu_custom_call.1} parent=1 // pred_check
      _
    $region3: #{tpu_custom_call.1} parent=1 // pred_check_branch
      %11 = sbr.rel (0) target = $region5
    $region4: #{tpu_custom_call.1} parent=1 // pred_region
      %s13 = ssub.s32 8192, 8192
      %14 = vsyncadd [#allocation3], %s13
      %s15 = sshll.u32 [#allocation2], 4
      %s16 = int_to_ptr.vmem [resolvable:$true] %s15
      %21 = dma.hbm_to_vmem [thread:$0]  %s0, 8192, %s16, [#allocation3], 2048, 2048, 128
    $region5: #{tpu_custom_call.1} parent=1 // pred_fallthru
      _
    // Predicated region
    $region6: #{tpu_custom_call.1} parent=1 // pred_check
      _
    $region7: #{tpu_custom_call.1} parent=1 // pred_check_branch
      %23 = sbr.rel (0) target = $region9
    $region8: #{tpu_custom_call.1} parent=1 // pred_region
      _
    $region9: #{tpu_custom_call.1} parent=1 // pred_fallthru
      _
    // Predicated region
    $region10: #{tpu_custom_call.1} parent=1 // pred_check
      _
    $region11: #{tpu_custom_call.1} parent=1 // pred_check_branch
      %25 = sbr.rel (0) target = $region13
    $region12: #{tpu_custom_call.1} parent=1 // pred_region
      _
    $region13: #{tpu_custom_call.1} parent=1 // pred_fallthru
      _
    // Predicated region
    $region14: #{tpu_custom_call.1} parent=1 // pred_check
      _
    $region15: #{tpu_custom_call.1} parent=1 // pred_check_branch
      %27 = sbr.rel (0) target = $region17
    $region16: #{tpu_custom_call.1} parent=1 // pred_region
      %28 = dma.done [#allocation3], 8192
    $region17: #{tpu_custom_call.1} parent=1 // pred_fallthru
      _
    %v29 = vld [vmem:[%s1] sm:$0xff]
    %v30 = vld [vmem:[%s1 + $0x8] sm:$0xff]
    %v31 = vld [vmem:[%s1 + $0x10] sm:$0xff]
    %v32 = vld [vmem:[%s1 + $0x18] sm:$0xff]
    %v33 = vld [vmem:[%s1 + $0x20] sm:$0xff]
    %v34 = vld [vmem:[%s1 + $0x28] sm:$0xff]
    %v35 = vld [vmem:[%s1 + $0x30] sm:$0xff]
    %v36 = vld [vmem:[%s1 + $0x38] sm:$0xff]
    %v37 = vld [vmem:[%s2] sm:$0xff]
    %v38 = vld [vmem:[%s2 + $0x8] sm:$0xff]
    %v39 = vld [vmem:[%s2 + $0x10] sm:$0xff]
    %v40 = vld [vmem:[%s2 + $0x18] sm:$0xff]
    %v41 = vld [vmem:[%s2 + $0x20] sm:$0xff]
    %v42 = vld [vmem:[%s2 + $0x28] sm:$0xff]
    %v43 = vld [vmem:[%s2 + $0x30] sm:$0xff]
    %v44 = vld [vmem:[%s2 + $0x38] sm:$0xff]
    %46 = vset.pattern.permute.xlu0 0
    %47 = vperm.xlu0 %46, %v37
    %v48 = vpop.permute.xlu0 %47
    %51 = vset.pattern.permute.xlu0 0
    %52 = vperm.xlu0 %51, %v38
    %v53 = vpop.permute.xlu0 %52
    %56 = vset.pattern.permute.xlu0 0
    %57 = vperm.xlu0 %56, %v39
    %v58 = vpop.permute.xlu0 %57
    %61 = vset.pattern.permute.xlu0 0
    %62 = vperm.xlu0 %61, %v40
    %v63 = vpop.permute.xlu0 %62
    %66 = vset.pattern.permute.xlu0 0
    %67 = vperm.xlu0 %66, %v41
    %v68 = vpop.permute.xlu0 %67
    %71 = vset.pattern.permute.xlu0 0
    %72 = vperm.xlu0 %71, %v42
    %v73 = vpop.permute.xlu0 %72
    %76 = vset.pattern.permute.xlu0 0
    %77 = vperm.xlu0 %76, %v43
    %v78 = vpop.permute.xlu0 %77
    %81 = vset.pattern.permute.xlu0 0
    %82 = vperm.xlu0 %81, %v44
    %v83 = vpop.permute.xlu0 %82
    loop: start=0, step=1, limit=4
    $region18: #{tpu_custom_call.1} parent=1 // loop_pre_header
      _
    $region19: #{tpu_custom_call.1} parent=1 // loop_header
      %s86 = sphi 0, %s90
      %p87 = scmp.ge.s32.totalorder %s86, 4
    $region20: #{tpu_custom_call.1} parent=1 // loop_header_branch
      %89 = sbr.rel (%p87) target = $region24
    $region21: #{tpu_custom_call.1} parent=1 // loop_body
      %s91 = smul.u32 %s86, 32
      %s92 = sadd.s32 0, %s91
      %s93 = smul.addr %s92, 4
      %s94 = scalar_lea.vmem [#allocation2], %s93
      %v95 = vld [vmem:[%s94] sm:$0xff]
      %v96 = vld [vmem:[%s94 + $0x8] sm:$0xff]
      %v99 = vcombine.high %v95, %v95
      %v100 = vcombine.high %v96, %v96
      %vm101 = vcmask 31744
      %v103 = vsel %vm101, %v29, 0
      %v106 = vsel %vm101, %v30, 0
      %v109 = vsel %vm101, %v31, 0
      %v112 = vsel %vm101, %v32, 0
      %v115 = vsel %vm101, %v33, 0
      %v118 = vsel %vm101, %v34, 0
      %v121 = vsel %vm101, %v35, 0
      %v124 = vsel %vm101, %v36, 0
      %vm126 = vcmask 1043456
      %v127 = vsel %vm126, %v95, 0
      %v129 = vsel %vm126, %v99, 0
      %v131 = vsel %vm126, %v96, 0
      %v133 = vsel %vm126, %v100, 0
      %135 = vmatprep.subr.mxu0 %v129
      %136 = vmatpush1.msra.mxu0 %v127
      %137 = vmatprep.subr.mxu0 0.0
      %138 = vmatpush1.msra.mxu0 0.0
      %139 = vmatprep.subr.mxu0 0.0
      %140 = vmatpush1.msra.mxu0 0.0
      %141 = vmatprep.subr.mxu0 0.0
      %142 = vmatpush1.msra.mxu0 0.0
      %143 = vmatprep.subr.mxu0 0.0
      %144 = vmatpush1.msra.mxu0 0.0
      %145 = vmatprep.subr.mxu0 0.0
      %146 = vmatpush1.msra.mxu0 0.0
      %147 = vmatprep.subr.mxu0 0.0
      %148 = vmatpush1.msra.mxu0 0.0
      %149 = vmatprep.subr.mxu0 0.0
      %150 = vmatpush1.msra.mxu0 0.0
      %151 = vmatprep.subr.mxu0 0.0
      %152 = vmatpush1.msra.mxu0 0.0
      %153 = vmatprep.subr.mxu0 0.0
      %154 = vmatpush1.msra.mxu0 0.0
      %155 = vmatprep.subr.mxu0 0.0
      %156 = vmatpush1.msra.mxu0 0.0
      %157 = vmatprep.subr.mxu0 0.0
      %158 = vmatpush1.msra.mxu0 0.0
      %159 = vmatprep.subr.mxu0 0.0
      %160 = vmatpush1.msra.mxu0 0.0
      %161 = vmatprep.subr.mxu0 0.0
      %162 = vmatpush1.msra.mxu0 0.0
      %163 = vmatprep.subr.mxu0 0.0
      %164 = vmatpush1.msra.mxu0 0.0
      %165 = vmatprep.subr.mxu0 0.0
      %166 = vmatpush1.msra.mxu0 0.0
      %167 = vmatprep.subr.mxu0 0.0
      %168 = vmatpush1.msra.mxu0 0.0
      %169 = vmatprep.subr.mxu0 0.0
      %170 = vmatpush1.msra.mxu0 0.0
      %171 = vmatprep.subr.mxu0 0.0
      %172 = vmatpush1.msra.mxu0 0.0
      %173 = vmatprep.subr.mxu0 0.0
      %174 = vmatpush1.msra.mxu0 0.0
      %175 = vmatprep.subr.mxu0 0.0
      %176 = vmatpush1.msra.mxu0 0.0
      %177 = vmatprep.subr.mxu0 0.0
      %178 = vmatpush1.msra.mxu0 0.0
      %179 = vmatprep.subr.mxu0 0.0
      %180 = vmatpush1.msra.mxu0 0.0
      %181 = vmatprep.subr.mxu0 0.0
      %182 = vmatpush1.msra.mxu0 0.0
      %183 = vmatprep.subr.mxu0 0.0
      %184 = vmatpush1.msra.mxu0 0.0
      %185 = vmatprep.subr.mxu0 0.0
      %186 = vmatpush1.msra.mxu0 0.0
      %187 = vmatprep.subr.mxu0 0.0
      %188 = vmatpush1.msra.mxu0 0.0
      %189 = vmatprep.subr.mxu0 0.0
      %190 = vmatpush1.msra.mxu0 0.0
      %191 = vmatprep.subr.mxu0 0.0
      %192 = vmatpush1.msra.mxu0 0.0
      %193 = vmatprep.subr.mxu0 0.0
      %194 = vmatpush1.msra.mxu0 0.0
      %195 = vmatprep.subr.mxu0 0.0
      %196 = vmatpush1.msra.mxu0 0.0
      %197 = vmatprep.subr.mxu0 0.0
      %198 = vmatpush1.msra.mxu0 0.0
      %199 = vmatprep.mubr.f32.mxu0 0.0
      %200 = vmatmul.mubr.f32.gmra.mrb[0].mxu0 %v103
      %v201 = vpop.f32.mrb[0].mxu0
      %v202 = vadd.f32 %v48, %v201
      %v203 = vpop.f32.mrb[0].mxu0
      %v204 = vadd.f32 %v48, %v203
      %205 = vmatprep.mubr.f32.mxu0 0.0
      %206 = vmatmul.mubr.f32.gmra.mrb[0].mxu0 %v106
      %v207 = vpop.f32.mrb[0].mxu0
      %v208 = vadd.f32 %v53, %v207
      %v209 = vpop.f32.mrb[0].mxu0
      %v210 = vadd.f32 %v53, %v209
      %211 = vmatprep.mubr.f32.mxu0 0.0
      %212 = vmatmul.mubr.f32.gmra.mrb[0].mxu0 %v109
      %v213 = vpop.f32.mrb[0].mxu0
      %v214 = vadd.f32 %v58, %v213
      %v215 = vpop.f32.mrb[0].mxu0
      %v216 = vadd.f32 %v58, %v215
      %217 = vmatprep.mubr.f32.mxu0 0.0
      %218 = vmatmul.mubr.f32.gmra.mrb[0].mxu0 %v112
      %v219 = vpop.f32.mrb[0].mxu0
      %v220 = vadd.f32 %v63, %v219
      %v221 = vpop.f32.mrb[0].mxu0
      %v222 = vadd.f32 %v63, %v221
      %223 = vmatprep.mubr.f32.mxu0 0.0
      %224 = vmatmul.mubr.f32.gmra.mrb[0].mxu0 %v115
      %v225 = vpop.f32.mrb[0].mxu0
      %v226 = vadd.f32 %v68, %v225
      %v227 = vpop.f32.mrb[0].mxu0
      %v228 = vadd.f32 %v68, %v227
      %229 = vmatprep.mubr.f32.mxu0 0.0
      %230 = vmatmul.mubr.f32.gmra.mrb[0].mxu0 %v118
      %v231 = vpop.f32.mrb[0].mxu0
      %v232 = vadd.f32 %v73, %v231
      %v233 = vpop.f32.mrb[0].mxu0
      %v234 = vadd.f32 %v73, %v233
      %235 = vmatprep.mubr.f32.mxu0 0.0
      %236 = vmatmul.mubr.f32.gmra.mrb[0].mxu0 %v121
      %v237 = vpop.f32.mrb[0].mxu0
      %v238 = vadd.f32 %v78, %v237
      %v239 = vpop.f32.mrb[0].mxu0
      %v240 = vadd.f32 %v78, %v239
      %241 = vmatprep.mubr.f32.mxu0 0.0
      %242 = vmatmul.mubr.f32.gmra.mrb[0].mxu0 %v124
      %v243 = vpop.f32.mrb[0].mxu0
      %v244 = vadd.f32 %v83, %v243
      %v245 = vpop.f32.mrb[0].mxu0
      %v246 = vadd.f32 %v83, %v245
      %247 = vdwg.mxu0
      %248 = vmatprep.subr.mxu0 %v133
      %249 = vmatpush1.msra.mxu0 %v131
      %250 = vmatprep.subr.mxu0 0.0
      %251 = vmatpush1.msra.mxu0 0.0
      %252 = vmatprep.subr.mxu0 0.0
      %253 = vmatpush1.msra.mxu0 0.0
      %254 = vmatprep.subr.mxu0 0.0
      %255 = vmatpush1.msra.mxu0 0.0
      %256 = vmatprep.subr.mxu0 0.0
      %257 = vmatpush1.msra.mxu0 0.0
      %258 = vmatprep.subr.mxu0 0.0
      %259 = vmatpush1.msra.mxu0 0.0
      %260 = vmatprep.subr.mxu0 0.0
      %261 = vmatpush1.msra.mxu0 0.0
      %262 = vmatprep.subr.mxu0 0.0
      %263 = vmatpush1.msra.mxu0 0.0
      %264 = vmatprep.subr.mxu0 0.0
      %265 = vmatpush1.msra.mxu0 0.0
      %266 = vmatprep.subr.mxu0 0.0
      %267 = vmatpush1.msra.mxu0 0.0
      %268 = vmatprep.subr.mxu0 0.0
      %269 = vmatpush1.msra.mxu0 0.0
      %270 = vmatprep.subr.mxu0 0.0
      %271 = vmatpush1.msra.mxu0 0.0
      %272 = vmatprep.subr.mxu0 0.0
      %273 = vmatpush1.msra.mxu0 0.0
      %274 = vmatprep.subr.mxu0 0.0
      %275 = vmatpush1.msra.mxu0 0.0
      %276 = vmatprep.subr.mxu0 0.0
      %277 = vmatpush1.msra.mxu0 0.0
      %278 = vmatprep.subr.mxu0 0.0
      %279 = vmatpush1.msra.mxu0 0.0
      %280 = vmatprep.subr.mxu0 0.0
      %281 = vmatpush1.msra.mxu0 0.0
      %282 = vmatprep.subr.mxu0 0.0
      %283 = vmatpush1.msra.mxu0 0.0
      %284 = vmatprep.subr.mxu0 0.0
      %285 = vmatpush1.msra.mxu0 0.0
      %286 = vmatprep.subr.mxu0 0.0
      %287 = vmatpush1.msra.mxu0 0.0
      %288 = vmatprep.subr.mxu0 0.0
      %289 = vmatpush1.msra.mxu0 0.0
      %290 = vmatprep.subr.mxu0 0.0
      %291 = vmatpush1.msra.mxu0 0.0
      %292 = vmatprep.subr.mxu0 0.0
      %293 = vmatpush1.msra.mxu0 0.0
      %294 = vmatprep.subr.mxu0 0.0
      %295 = vmatpush1.msra.mxu0 0.0
      %296 = vmatprep.subr.mxu0 0.0
      %297 = vmatpush1.msra.mxu0 0.0
      %298 = vmatprep.subr.mxu0 0.0
      %299 = vmatpush1.msra.mxu0 0.0
      %300 = vmatprep.subr.mxu0 0.0
      %301 = vmatpush1.msra.mxu0 0.0
      %302 = vmatprep.subr.mxu0 0.0
      %303 = vmatpush1.msra.mxu0 0.0
      %304 = vmatprep.subr.mxu0 0.0
      %305 = vmatpush1.msra.mxu0 0.0
      %306 = vmatprep.subr.mxu0 0.0
      %307 = vmatpush1.msra.mxu0 0.0
      %308 = vmatprep.subr.mxu0 0.0
      %309 = vmatpush1.msra.mxu0 0.0
      %310 = vmatprep.subr.mxu0 0.0
      %311 = vmatpush1.msra.mxu0 0.0
      %312 = vmatprep.mubr.f32.mxu0 0.0
      %313 = vmatmul.mubr.f32.gmra.mrb[0].mxu0 %v103
      %v314 = vpop.f32.mrb[0].mxu0
      %v315 = vadd.f32 %v48, %v314
      %v316 = vpop.f32.mrb[0].mxu0
      %v317 = vadd.f32 %v48, %v316
      %318 = vmatprep.mubr.f32.mxu0 0.0
      %319 = vmatmul.mubr.f32.gmra.mrb[0].mxu0 %v106
      %v320 = vpop.f32.mrb[0].mxu0
      %v321 = vadd.f32 %v53, %v320
      %v322 = vpop.f32.mrb[0].mxu0
      %v323 = vadd.f32 %v53, %v322
      %324 = vmatprep.mubr.f32.mxu0 0.0
      %325 = vmatmul.mubr.f32.gmra.mrb[0].mxu0 %v109
      %v326 = vpop.f32.mrb[0].mxu0
      %v327 = vadd.f32 %v58, %v326
      %v328 = vpop.f32.mrb[0].mxu0
      %v329 = vadd.f32 %v58, %v328
      %330 = vmatprep.mubr.f32.mxu0 0.0
      %331 = vmatmul.mubr.f32.gmra.mrb[0].mxu0 %v112
      %v332 = vpop.f32.mrb[0].mxu0
      %v333 = vadd.f32 %v63, %v332
      %v334 = vpop.f32.mrb[0].mxu0
      %v335 = vadd.f32 %v63, %v334
      %336 = vmatprep.mubr.f32.mxu0 0.0
      %337 = vmatmul.mubr.f32.gmra.mrb[0].mxu0 %v115
      %v338 = vpop.f32.mrb[0].mxu0
      %v339 = vadd.f32 %v68, %v338
      %v340 = vpop.f32.mrb[0].mxu0
      %v341 = vadd.f32 %v68, %v340
      %342 = vmatprep.mubr.f32.mxu0 0.0
      %343 = vmatmul.mubr.f32.gmra.mrb[0].mxu0 %v118
      %v344 = vpop.f32.mrb[0].mxu0
      %v345 = vadd.f32 %v73, %v344
      %v346 = vpop.f32.mrb[0].mxu0
      %v347 = vadd.f32 %v73, %v346
      %348 = vmatprep.mubr.f32.mxu0 0.0
      %349 = vmatmul.mubr.f32.gmra.mrb[0].mxu0 %v121
      %v350 = vpop.f32.mrb[0].mxu0
      %v351 = vadd.f32 %v78, %v350
      %v352 = vpop.f32.mrb[0].mxu0
      %v353 = vadd.f32 %v78, %v352
      %354 = vmatprep.mubr.f32.mxu0 0.0
      %355 = vmatmul.mubr.f32.gmra.mrb[0].mxu0 %v124
      %v356 = vpop.f32.mrb[0].mxu0
      %v357 = vadd.f32 %v83, %v356
      %v358 = vpop.f32.mrb[0].mxu0
      %v359 = vadd.f32 %v83, %v358
      %360 = vdwg.mxu0
      %v361 = vtanh.pop %v202
      %v362 = vtanh.pop %v204
      %v363 = vtanh.pop %v315
      %v364 = vtanh.pop %v317
      %v365 = vtanh.pop %v208
      %v366 = vtanh.pop %v210
      %v367 = vtanh.pop %v321
      %v368 = vtanh.pop %v323
      %v369 = vtanh.pop %v214
      %v370 = vtanh.pop %v216
      %v371 = vtanh.pop %v327
      %v372 = vtanh.pop %v329
      %v373 = vtanh.pop %v220
      %v374 = vtanh.pop %v222
      %v375 = vtanh.pop %v333
      %v376 = vtanh.pop %v335
      %v377 = vtanh.pop %v226
      %v378 = vtanh.pop %v228
      %v379 = vtanh.pop %v339
      %v380 = vtanh.pop %v341
      %v381 = vtanh.pop %v232
      %v382 = vtanh.pop %v234
      %v383 = vtanh.pop %v345
      %v384 = vtanh.pop %v347
      %v385 = vtanh.pop %v238
      %v386 = vtanh.pop %v240
      %v387 = vtanh.pop %v351
      %v388 = vtanh.pop %v353
      %v389 = vtanh.pop %v244
      %v390 = vtanh.pop %v246
      %v391 = vtanh.pop %v357
      %v392 = vtanh.pop %v359
      %s393 = smul.u32 %s86, 256
      %s394 = sadd.s32 0, %s393
      %s395 = smul.addr %s394, 8
      %s396 = scalar_lea.vmem [#allocation5], %s395
      %397 = vst [vmem:[%s396] sm:$0xff] %v361
      %398 = vst [vmem:[%s396 + $0x8] sm:$0xff] %v362
      %399 = vst [vmem:[%s396 + $0x10] sm:$0xff] %v363
      %400 = vst [vmem:[%s396 + $0x18] sm:$0xff] %v364
      %401 = vst [vmem:[%s396 + $0x100] sm:$0xff] %v365
      %402 = vst [vmem:[%s396 + $0x108] sm:$0xff] %v366
      %403 = vst [vmem:[%s396 + $0x110] sm:$0xff] %v367
      %404 = vst [vmem:[%s396 + $0x118] sm:$0xff] %v368
      %405 = vst [vmem:[%s396 + $0x200] sm:$0xff] %v369
      %406 = vst [vmem:[%s396 + $0x208] sm:$0xff] %v370
      %407 = vst [vmem:[%s396 + $0x210] sm:$0xff] %v371
      %408 = vst [vmem:[%s396 + $0x218] sm:$0xff] %v372
      %409 = vst [vmem:[%s396 + $0x300] sm:$0xff] %v373
      %410 = vst [vmem:[%s396 + $0x308] sm:$0xff] %v374
      %411 = vst [vmem:[%s396 + $0x310] sm:$0xff] %v375
      %412 = vst [vmem:[%s396 + $0x318] sm:$0xff] %v376
      %413 = vst [vmem:[%s396 + $0x400] sm:$0xff] %v377
      %414 = vst [vmem:[%s396 + $0x408] sm:$0xff] %v378
      %415 = vst [vmem:[%s396 + $0x410] sm:$0xff] %v379
      %416 = vst [vmem:[%s396 + $0x418] sm:$0xff] %v380
      %417 = vst [vmem:[%s396 + $0x500] sm:$0xff] %v381
      %418 = vst [vmem:[%s396 + $0x508] sm:$0xff] %v382
      %419 = vst [vmem:[%s396 + $0x510] sm:$0xff] %v383
      %420 = vst [vmem:[%s396 + $0x518] sm:$0xff] %v384
      %421 = vst [vmem:[%s396 + $0x600] sm:$0xff] %v385
      %422 = vst [vmem:[%s396 + $0x608] sm:$0xff] %v386
      %423 = vst [vmem:[%s396 + $0x610] sm:$0xff] %v387
      %424 = vst [vmem:[%s396 + $0x618] sm:$0xff] %v388
      %425 = vst [vmem:[%s396 + $0x700] sm:$0xff] %v389
      %426 = vst [vmem:[%s396 + $0x708] sm:$0xff] %v390
      %427 = vst [vmem:[%s396 + $0x710] sm:$0xff] %v391
      %428 = vst [vmem:[%s396 + $0x718] sm:$0xff] %v392
      %s429 = sadd.s32 4, %s91
      %s430 = smul.addr %s429, 4
      %s431 = scalar_lea.vmem [#allocation2], %s430
      %v432 = vld [vmem:[%s431] sm:$0xff]
      %v433 = vld [vmem:[%s431 + $0x8] sm:$0xff]
      %v436 = vcombine.high %v432, %v432
      %v437 = vcombine.high %v433, %v433
      %v438 = vsel %vm126, %v432, 0
      %v440 = vsel %vm126, %v436, 0
      %v442 = vsel %vm126, %v433, 0
      %v444 = vsel %vm126, %v437, 0
      %446 = vmatprep.subr.mxu0 %v440
      %447 = vmatpush1.msra.mxu0 %v438
      %448 = vmatprep.subr.mxu0 0.0
      %449 = vmatpush1.msra.mxu0 0.0
      %450 = vmatprep.subr.mxu0 0.0
      %451 = vmatpush1.msra.mxu0 0.0
      %452 = vmatprep.subr.mxu0 0.0
      %453 = vmatpush1.msra.mxu0 0.0
      %454 = vmatprep.subr.mxu0 0.0
      %455 = vmatpush1.msra.mxu0 0.0
      %456 = vmatprep.subr.mxu0 0.0
      %457 = vmatpush1.msra.mxu0 0.0
      %458 = vmatprep.subr.mxu0 0.0
      %459 = vmatpush1.msra.mxu0 0.0
      %460 = vmatprep.subr.mxu0 0.0
      %461 = vmatpush1.msra.mxu0 0.0
      %462 = vmatprep.subr.mxu0 0.0
      %463 = vmatpush1.msra.mxu0 0.0
      %464 = vmatprep.subr.mxu0 0.0
      %465 = vmatpush1.msra.mxu0 0.0
      %466 = vmatprep.subr.mxu0 0.0
      %467 = vmatpush1.msra.mxu0 0.0
      %468 = vmatprep.subr.mxu0 0.0
      %469 = vmatpush1.msra.mxu0 0.0
      %470 = vmatprep.subr.mxu0 0.0
      %471 = vmatpush1.msra.mxu0 0.0
      %472 = vmatprep.subr.mxu0 0.0
      %473 = vmatpush1.msra.mxu0 0.0
      %474 = vmatprep.subr.mxu0 0.0
      %475 = vmatpush1.msra.mxu0 0.0
      %476 = vmatprep.subr.mxu0 0.0
      %477 = vmatpush1.msra.mxu0 0.0
      %478 = vmatprep.subr.mxu0 0.0
      %479 = vmatpush1.msra.mxu0 0.0
      %480 = vmatprep.subr.mxu0 0.0
      %481 = vmatpush1.msra.mxu0 0.0
      %482 = vmatprep.subr.mxu0 0.0
      %483 = vmatpush1.msra.mxu0 0.0
      %484 = vmatprep.subr.mxu0 0.0
      %485 = vmatpush1.msra.mxu0 0.0
      %486 = vmatprep.subr.mxu0 0.0
      %487 = vmatpush1.msra.mxu0 0.0
      %488 = vmatprep.subr.mxu0 0.0
      %489 = vmatpush1.msra.mxu0 0.0
      %490 = vmatprep.subr.mxu0 0.0
      %491 = vmatpush1.msra.mxu0 0.0
      %492 = vmatprep.subr.mxu0 0.0
      %493 = vmatpush1.msra.mxu0 0.0
      %494 = vmatprep.subr.mxu0 0.0
      %495 = vmatpush1.msra.mxu0 0.0
      %496 = vmatprep.subr.mxu0 0.0
      %497 = vmatpush1.msra.mxu0 0.0
      %498 = vmatprep.subr.mxu0 0.0
      %499 = vmatpush1.msra.mxu0 0.0
      %500 = vmatprep.subr.mxu0 0.0
      %501 = vmatpush1.msra.mxu0 0.0
      %502 = vmatprep.subr.mxu0 0.0
      %503 = vmatpush1.msra.mxu0 0.0
      %504 = vmatprep.subr.mxu0 0.0
      %505 = vmatpush1.msra.mxu0 0.0
      %506 = vmatprep.subr.mxu0 0.0
      %507 = vmatpush1.msra.mxu0 0.0
      %508 = vmatprep.subr.mxu0 0.0
      %509 = vmatpush1.msra.mxu0 0.0
      %510 = vmatprep.mubr.f32.mxu0 0.0
      %511 = vmatmul.mubr.f32.gmra.mrb[0].mxu0 %v103
      %v512 = vpop.f32.mrb[0].mxu0
      %v513 = vadd.f32 %v48, %v512
      %v514 = vpop.f32.mrb[0].mxu0
      %v515 = vadd.f32 %v48, %v514
      %516 = vmatprep.mubr.f32.mxu0 0.0
      %517 = vmatmul.mubr.f32.gmra.mrb[0].mxu0 %v106
      %v518 = vpop.f32.mrb[0].mxu0
      %v519 = vadd.f32 %v53, %v518
      %v520 = vpop.f32.mrb[0].mxu0
      %v521 = vadd.f32 %v53, %v520
      %522 = vmatprep.mubr.f32.mxu0 0.0
      %523 = vmatmul.mubr.f32.gmra.mrb[0].mxu0 %v109
      %v524 = vpop.f32.mrb[0].mxu0
      %v525 = vadd.f32 %v58, %v524
      %v526 = vpop.f32.mrb[0].mxu0
      %v527 = vadd.f32 %v58, %v526
      %528 = vmatprep.mubr.f32.mxu0 0.0
      %529 = vmatmul.mubr.f32.gmra.mrb[0].mxu0 %v112
      %v530 = vpop.f32.mrb[0].mxu0
      %v531 = vadd.f32 %v63, %v530
      %v532 = vpop.f32.mrb[0].mxu0
      %v533 = vadd.f32 %v63, %v532
      %534 = vmatprep.mubr.f32.mxu0 0.0
      %535 = vmatmul.mubr.f32.gmra.mrb[0].mxu0 %v115
      %v536 = vpop.f32.mrb[0].mxu0
      %v537 = vadd.f32 %v68, %v536
      %v538 = vpop.f32.mrb[0].mxu0
      %v539 = vadd.f32 %v68, %v538
      %540 = vmatprep.mubr.f32.mxu0 0.0
      %541 = vmatmul.mubr.f32.gmra.mrb[0].mxu0 %v118
      %v542 = vpop.f32.mrb[0].mxu0
      %v543 = vadd.f32 %v73, %v542
      %v544 = vpop.f32.mrb[0].mxu0
      %v545 = vadd.f32 %v73, %v544
      %546 = vmatprep.mubr.f32.mxu0 0.0
      %547 = vmatmul.mubr.f32.gmra.mrb[0].mxu0 %v121
      %v548 = vpop.f32.mrb[0].mxu0
      %v549 = vadd.f32 %v78, %v548
      %v550 = vpop.f32.mrb[0].mxu0
      %v551 = vadd.f32 %v78, %v550
      %552 = vmatprep.mubr.f32.mxu0 0.0
      %553 = vmatmul.mubr.f32.gmra.mrb[0].mxu0 %v124
      %v554 = vpop.f32.mrb[0].mxu0
      %v555 = vadd.f32 %v83, %v554
      %v556 = vpop.f32.mrb[0].mxu0
      %v557 = vadd.f32 %v83, %v556
      %558 = vdwg.mxu0
      %559 = vmatprep.subr.mxu0 %v444
      %560 = vmatpush1.msra.mxu0 %v442
      %561 = vmatprep.subr.mxu0 0.0
      %562 = vmatpush1.msra.mxu0 0.0
      %563 = vmatprep.subr.mxu0 0.0
      %564 = vmatpush1.msra.mxu0 0.0
      %565 = vmatprep.subr.mxu0 0.0
      %566 = vmatpush1.msra.mxu0 0.0
      %567 = vmatprep.subr.mxu0 0.0
      %568 = vmatpush1.msra.mxu0 0.0
      %569 = vmatprep.subr.mxu0 0.0
      %570 = vmatpush1.msra.mxu0 0.0
      %571 = vmatprep.subr.mxu0 0.0
      %572 = vmatpush1.msra.mxu0 0.0
      %573 = vmatprep.subr.mxu0 0.0
      %574 = vmatpush1.msra.mxu0 0.0
      %575 = vmatprep.subr.mxu0 0.0
      %576 = vmatpush1.msra.mxu0 0.0
      %577 = vmatprep.subr.mxu0 0.0
      %578 = vmatpush1.msra.mxu0 0.0
      %579 = vmatprep.subr.mxu0 0.0
      %580 = vmatpush1.msra.mxu0 0.0
      %581 = vmatprep.subr.mxu0 0.0
      %582 = vmatpush1.msra.mxu0 0.0
      %583 = vmatprep.subr.mxu0 0.0
      %584 = vmatpush1.msra.mxu0 0.0
      %585 = vmatprep.subr.mxu0 0.0
      %586 = vmatpush1.msra.mxu0 0.0
      %587 = vmatprep.subr.mxu0 0.0
      %588 = vmatpush1.msra.mxu0 0.0
      %589 = vmatprep.subr.mxu0 0.0
      %590 = vmatpush1.msra.mxu0 0.0
      %591 = vmatprep.subr.mxu0 0.0
      %592 = vmatpush1.msra.mxu0 0.0
      %593 = vmatprep.subr.mxu0 0.0
      %594 = vmatpush1.msra.mxu0 0.0
      %595 = vmatprep.subr.mxu0 0.0
      %596 = vmatpush1.msra.mxu0 0.0
      %597 = vmatprep.subr.mxu0 0.0
      %598 = vmatpush1.msra.mxu0 0.0
      %599 = vmatprep.subr.mxu0 0.0
      %600 = vmatpush1.msra.mxu0 0.0
      %601 = vmatprep.subr.mxu0 0.0
      %602 = vmatpush1.msra.mxu0 0.0
      %603 = vmatprep.subr.mxu0 0.0
      %604 = vmatpush1.msra.mxu0 0.0
      %605 = vmatprep.subr.mxu0 0.0
      %606 = vmatpush1.msra.mxu0 0.0
      %607 = vmatprep.subr.mxu0 0.0
      %608 = vmatpush1.msra.mxu0 0.0
      %609 = vmatprep.subr.mxu0 0.0
      %610 = vmatpush1.msra.mxu0 0.0
      %611 = vmatprep.subr.mxu0 0.0
      %612 = vmatpush1.msra.mxu0 0.0
      %613 = vmatprep.subr.mxu0 0.0
      %614 = vmatpush1.msra.mxu0 0.0
      %615 = vmatprep.subr.mxu0 0.0
      %616 = vmatpush1.msra.mxu0 0.0
      %617 = vmatprep.subr.mxu0 0.0
      %618 = vmatpush1.msra.mxu0 0.0
      %619 = vmatprep.subr.mxu0 0.0
      %620 = vmatpush1.msra.mxu0 0.0
      %621 = vmatprep.subr.mxu0 0.0
      %622 = vmatpush1.msra.mxu0 0.0
      %623 = vmatprep.mubr.f32.mxu0 0.0
      %624 = vmatmul.mubr.f32.gmra.mrb[0].mxu0 %v103
      %v625 = vpop.f32.mrb[0].mxu0
      %v626 = vadd.f32 %v48, %v625
      %v627 = vpop.f32.mrb[0].mxu0
      %v628 = vadd.f32 %v48, %v627
      %629 = vmatprep.mubr.f32.mxu0 0.0
      %630 = vmatmul.mubr.f32.gmra.mrb[0].mxu0 %v106
      %v631 = vpop.f32.mrb[0].mxu0
      %v632 = vadd.f32 %v53, %v631
      %v633 = vpop.f32.mrb[0].mxu0
      %v634 = vadd.f32 %v53, %v633
      %635 = vmatprep.mubr.f32.mxu0 0.0
      %636 = vmatmul.mubr.f32.gmra.mrb[0].mxu0 %v109
      %v637 = vpop.f32.mrb[0].mxu0
      %v638 = vadd.f32 %v58, %v637
      %v639 = vpop.f32.mrb[0].mxu0
      %v640 = vadd.f32 %v58, %v639
      %641 = vmatprep.mubr.f32.mxu0 0.0
      %642 = vmatmul.mubr.f32.gmra.mrb[0].mxu0 %v112
      %v643 = vpop.f32.mrb[0].mxu0
      %v644 = vadd.f32 %v63, %v643
      %v645 = vpop.f32.mrb[0].mxu0
      %v646 = vadd.f32 %v63, %v645
      %647 = vmatprep.mubr.f32.mxu0 0.0
      %648 = vmatmul.mubr.f32.gmra.mrb[0].mxu0 %v115
      %v649 = vpop.f32.mrb[0].mxu0
      %v650 = vadd.f32 %v68, %v649
      %v651 = vpop.f32.mrb[0].mxu0
      %v652 = vadd.f32 %v68, %v651
      %653 = vmatprep.mubr.f32.mxu0 0.0
      %654 = vmatmul.mubr.f32.gmra.mrb[0].mxu0 %v118
      %v655 = vpop.f32.mrb[0].mxu0
      %v656 = vadd.f32 %v73, %v655
      %v657 = vpop.f32.mrb[0].mxu0
      %v658 = vadd.f32 %v73, %v657
      %659 = vmatprep.mubr.f32.mxu0 0.0
      %660 = vmatmul.mubr.f32.gmra.mrb[0].mxu0 %v121
      %v661 = vpop.f32.mrb[0].mxu0
      %v662 = vadd.f32 %v78, %v661
      %v663 = vpop.f32.mrb[0].mxu0
      %v664 = vadd.f32 %v78, %v663
      %665 = vmatprep.mubr.f32.mxu0 0.0
      %666 = vmatmul.mubr.f32.gmra.mrb[0].mxu0 %v124
      %v667 = vpop.f32.mrb[0].mxu0
      %v668 = vadd.f32 %v83, %v667
      %v669 = vpop.f32.mrb[0].mxu0
      %v670 = vadd.f32 %v83, %v669
      %671 = vdwg.mxu0
      %v672 = vtanh.pop %v513
      %v673 = vtanh.pop %v515
      %v674 = vtanh.pop %v626
      %v675 = vtanh.pop %v628
      %v676 = vtanh.pop %v519
      %v677 = vtanh.pop %v521
      %v678 = vtanh.pop %v632
      %v679 = vtanh.pop %v634
      %v680 = vtanh.pop %v525
      %v681 = vtanh.pop %v527
      %v682 = vtanh.pop %v638
      %v683 = vtanh.pop %v640
      %v684 = vtanh.pop %v531
      %v685 = vtanh.pop %v533
      %v686 = vtanh.pop %v644
      %v687 = vtanh.pop %v646
      %v688 = vtanh.pop %v537
      %v689 = vtanh.pop %v539
      %v690 = vtanh.pop %v650
      %v691 = vtanh.pop %v652
      %v692 = vtanh.pop %v543
      %v693 = vtanh.pop %v545
      %v694 = vtanh.pop %v656
      %v695 = vtanh.pop %v658
      %v696 = vtanh.pop %v549
      %v697 = vtanh.pop %v551
      %v698 = vtanh.pop %v662
      %v699 = vtanh.pop %v664
      %v700 = vtanh.pop %v555
      %v701 = vtanh.pop %v557
      %v702 = vtanh.pop %v668
      %v703 = vtanh.pop %v670
      %s704 = sadd.s32 4, %s393
      %s705 = smul.addr %s704, 8
      %s706 = scalar_lea.vmem [#allocation5], %s705
      %707 = vst [vmem:[%s706] sm:$0xff] %v672
      %708 = vst [vmem:[%s706 + $0x8] sm:$0xff] %v673
      %709 = vst [vmem:[%s706 + $0x10] sm:$0xff] %v674
      %710 = vst [vmem:[%s706 + $0x18] sm:$0xff] %v675
      %711 = vst [vmem:[%s706 + $0x100] sm:$0xff] %v676
      %712 = vst [vmem:[%s706 + $0x108] sm:$0xff] %v677
      %713 = vst [vmem:[%s706 + $0x110] sm:$0xff] %v678
      %714 = vst [vmem:[%s706 + $0x118] sm:$0xff] %v679
      %715 = vst [vmem:[%s706 + $0x200] sm:$0xff] %v680
      %716 = vst [vmem:[%s706 + $0x208] sm:$0xff] %v681
      %717 = vst [vmem:[%s706 + $0x210] sm:$0xff] %v682
      %718 = vst [vmem:[%s706 + $0x218] sm:$0xff] %v683
      %719 = vst [vmem:[%s706 + $0x300] sm:$0xff] %v684
      %720 = vst [vmem:[%s706 + $0x308] sm:$0xff] %v685
      %721 = vst [vmem:[%s706 + $0x310] sm:$0xff] %v686
      %722 = vst [vmem:[%s706 + $0x318] sm:$0xff] %v687
      %723 = vst [vmem:[%s706 + $0x400] sm:$0xff] %v688
      %724 = vst [vmem:[%s706 + $0x408] sm:$0xff] %v689
      %725 = vst [vmem:[%s706 + $0x410] sm:$0xff] %v690
      %726 = vst [vmem:[%s706 + $0x418] sm:$0xff] %v691
      %727 = vst [vmem:[%s706 + $0x500] sm:$0xff] %v692
      %728 = vst [vmem:[%s706 + $0x508] sm:$0xff] %v693
      %729 = vst [vmem:[%s706 + $0x510] sm:$0xff] %v694
      %730 = vst [vmem:[%s706 + $0x518] sm:$0xff] %v695
      %731 = vst [vmem:[%s706 + $0x600] sm:$0xff] %v696
      %732 = vst [vmem:[%s706 + $0x608] sm:$0xff] %v697
      %733 = vst [vmem:[%s706 + $0x610] sm:$0xff] %v698
      %734 = vst [vmem:[%s706 + $0x618] sm:$0xff] %v699
      %735 = vst [vmem:[%s706 + $0x700] sm:$0xff] %v700
      %736 = vst [vmem:[%s706 + $0x708] sm:$0xff] %v701
      %737 = vst [vmem:[%s706 + $0x710] sm:$0xff] %v702
      %738 = vst [vmem:[%s706 + $0x718] sm:$0xff] %v703
      %s739 = sadd.s32 8, %s91
      %s740 = smul.addr %s739, 4
      %s741 = scalar_lea.vmem [#allocation2], %s740
      %v742 = vld [vmem:[%s741] sm:$0xff]
      %v743 = vld [vmem:[%s741 + $0x8] sm:$0xff]
      %v746 = vcombine.high %v742, %v742
      %v747 = vcombine.high %v743, %v743
      %v748 = vsel %vm126, %v742, 0
      %v750 = vsel %vm126, %v746, 0
      %v752 = vsel %vm126, %v743, 0
      %v754 = vsel %vm126, %v747, 0
      %756 = vmatprep.subr.mxu0 %v750
      %757 = vmatpush1.msra.mxu0 %v748
      %758 = vmatprep.subr.mxu0 0.0
      %759 = vmatpush1.msra.mxu0 0.0
      %760 = vmatprep.subr.mxu0 0.0
      %761 = vmatpush1.msra.mxu0 0.0
      %762 = vmatprep.subr.mxu0 0.0
      %763 = vmatpush1.msra.mxu0 0.0
      %764 = vmatprep.subr.mxu0 0.0
      %765 = vmatpush1.msra.mxu0 0.0
      %766 = vmatprep.subr.mxu0 0.0
      %767 = vmatpush1.msra.mxu0 0.0
      %768 = vmatprep.subr.mxu0 0.0
      %769 = vmatpush1.msra.mxu0 0.0
      %770 = vmatprep.subr.mxu0 0.0
      %771 = vmatpush1.msra.mxu0 0.0
      %772 = vmatprep.subr.mxu0 0.0
      %773 = vmatpush1.msra.mxu0 0.0
      %774 = vmatprep.subr.mxu0 0.0
      %775 = vmatpush1.msra.mxu0 0.0
      %776 = vmatprep.subr.mxu0 0.0
      %777 = vmatpush1.msra.mxu0 0.0
      %778 = vmatprep.subr.mxu0 0.0
      %779 = vmatpush1.msra.mxu0 0.0
      %780 = vmatprep.subr.mxu0 0.0
      %781 = vmatpush1.msra.mxu0 0.0
      %782 = vmatprep.subr.mxu0 0.0
      %783 = vmatpush1.msra.mxu0 0.0
      %784 = vmatprep.subr.mxu0 0.0
      %785 = vmatpush1.msra.mxu0 0.0
      %786 = vmatprep.subr.mxu0 0.0
      %787 = vmatpush1.msra.mxu0 0.0
      %788 = vmatprep.subr.mxu0 0.0
      %789 = vmatpush1.msra.mxu0 0.0
      %790 = vmatprep.subr.mxu0 0.0
      %791 = vmatpush1.msra.mxu0 0.0
      %792 = vmatprep.subr.mxu0 0.0
      %793 = vmatpush1.msra.mxu0 0.0
      %794 = vmatprep.subr.mxu0 0.0
      %795 = vmatpush1.msra.mxu0 0.0
      %796 = vmatprep.subr.mxu0 0.0
      %797 = vmatpush1.msra.mxu0 0.0
      %798 = vmatprep.subr.mxu0 0.0
      %799 = vmatpush1.msra.mxu0 0.0
      %800 = vmatprep.subr.mxu0 0.0
      %801 = vmatpush1.msra.mxu0 0.0
      %802 = vmatprep.subr.mxu0 0.0
      %803 = vmatpush1.msra.mxu0 0.0
      %804 = vmatprep.subr.mxu0 0.0
      %805 = vmatpush1.msra.mxu0 0.0
      %806 = vmatprep.subr.mxu0 0.0
      %807 = vmatpush1.msra.mxu0 0.0
      %808 = vmatprep.subr.mxu0 0.0
      %809 = vmatpush1.msra.mxu0 0.0
      %810 = vmatprep.subr.mxu0 0.0
      %811 = vmatpush1.msra.mxu0 0.0
      %812 = vmatprep.subr.mxu0 0.0
      %813 = vmatpush1.msra.mxu0 0.0
      %814 = vmatprep.subr.mxu0 0.0
      %815 = vmatpush1.msra.mxu0 0.0
      %816 = vmatprep.subr.mxu0 0.0
      %817 = vmatpush1.msra.mxu0 0.0
      %818 = vmatprep.subr.mxu0 0.0
      %819 = vmatpush1.msra.mxu0 0.0
      %820 = vmatprep.mubr.f32.mxu0 0.0
      %821 = vmatmul.mubr.f32.gmra.mrb[0].mxu0 %v103
      %v822 = vpop.f32.mrb[0].mxu0
      %v823 = vadd.f32 %v48, %v822
      %v824 = vpop.f32.mrb[0].mxu0
      %v825 = vadd.f32 %v48, %v824
      %826 = vmatprep.mubr.f32.mxu0 0.0
      %827 = vmatmul.mubr.f32.gmra.mrb[0].mxu0 %v106
      %v828 = vpop.f32.mrb[0].mxu0
      %v829 = vadd.f32 %v53, %v828
      %v830 = vpop.f32.mrb[0].mxu0
      %v831 = vadd.f32 %v53, %v830
      %832 = vmatprep.mubr.f32.mxu0 0.0
      %833 = vmatmul.mubr.f32.gmra.mrb[0].mxu0 %v109
      %v834 = vpop.f32.mrb[0].mxu0
      %v835 = vadd.f32 %v58, %v834
      %v836 = vpop.f32.mrb[0].mxu0
      %v837 = vadd.f32 %v58, %v836
      %838 = vmatprep.mubr.f32.mxu0 0.0
      %839 = vmatmul.mubr.f32.gmra.mrb[0].mxu0 %v112
      %v840 = vpop.f32.mrb[0].mxu0
      %v841 = vadd.f32 %v63, %v840
      %v842 = vpop.f32.mrb[0].mxu0
      %v843 = vadd.f32 %v63, %v842
      %844 = vmatprep.mubr.f32.mxu0 0.0
      %845 = vmatmul.mubr.f32.gmra.mrb[0].mxu0 %v115
      %v846 = vpop.f32.mrb[0].mxu0
      %v847 = vadd.f32 %v68, %v846
      %v848 = vpop.f32.mrb[0].mxu0
      %v849 = vadd.f32 %v68, %v848
      %850 = vmatprep.mubr.f32.mxu0 0.0
      %851 = vmatmul.mubr.f32.gmra.mrb[0].mxu0 %v118
      %v852 = vpop.f32.mrb[0].mxu0
      %v853 = vadd.f32 %v73, %v852
      %v854 = vpop.f32.mrb[0].mxu0
      %v855 = vadd.f32 %v73, %v854
      %856 = vmatprep.mubr.f32.mxu0 0.0
      %857 = vmatmul.mubr.f32.gmra.mrb[0].mxu0 %v121
      %v858 = vpop.f32.mrb[0].mxu0
      %v859 = vadd.f32 %v78, %v858
      %v860 = vpop.f32.mrb[0].mxu0
      %v861 = vadd.f32 %v78, %v860
      %862 = vmatprep.mubr.f32.mxu0 0.0
      %863 = vmatmul.mubr.f32.gmra.mrb[0].mxu0 %v124
      %v864 = vpop.f32.mrb[0].mxu0
      %v865 = vadd.f32 %v83, %v864
      %v866 = vpop.f32.mrb[0].mxu0
      %v867 = vadd.f32 %v83, %v866
      %868 = vdwg.mxu0
      %869 = vmatprep.subr.mxu0 %v754
      %870 = vmatpush1.msra.mxu0 %v752
      %871 = vmatprep.subr.mxu0 0.0
      %872 = vmatpush1.msra.mxu0 0.0
      %873 = vmatprep.subr.mxu0 0.0
      %874 = vmatpush1.msra.mxu0 0.0
      %875 = vmatprep.subr.mxu0 0.0
      %876 = vmatpush1.msra.mxu0 0.0
      %877 = vmatprep.subr.mxu0 0.0
      %878 = vmatpush1.msra.mxu0 0.0
      %879 = vmatprep.subr.mxu0 0.0
      %880 = vmatpush1.msra.mxu0 0.0
      %881 = vmatprep.subr.mxu0 0.0
      %882 = vmatpush1.msra.mxu0 0.0
      %883 = vmatprep.subr.mxu0 0.0
      %884 = vmatpush1.msra.mxu0 0.0
      %885 = vmatprep.subr.mxu0 0.0
      %886 = vmatpush1.msra.mxu0 0.0
      %887 = vmatprep.subr.mxu0 0.0
      %888 = vmatpush1.msra.mxu0 0.0
      %889 = vmatprep.subr.mxu0 0.0
      %890 = vmatpush1.msra.mxu0 0.0
      %891 = vmatprep.subr.mxu0 0.0
      %892 = vmatpush1.msra.mxu0 0.0
      %893 = vmatprep.subr.mxu0 0.0
      %894 = vmatpush1.msra.mxu0 0.0
      %895 = vmatprep.subr.mxu0 0.0
      %896 = vmatpush1.msra.mxu0 0.0
      %897 = vmatprep.subr.mxu0 0.0
      %898 = vmatpush1.msra.mxu0 0.0
      %899 = vmatprep.subr.mxu0 0.0
      %900 = vmatpush1.msra.mxu0 0.0
      %901 = vmatprep.subr.mxu0 0.0
      %902 = vmatpush1.msra.mxu0 0.0
      %903 = vmatprep.subr.mxu0 0.0
      %904 = vmatpush1.msra.mxu0 0.0
      %905 = vmatprep.subr.mxu0 0.0
      %906 = vmatpush1.msra.mxu0 0.0
      %907 = vmatprep.subr.mxu0 0.0
      %908 = vmatpush1.msra.mxu0 0.0
      %909 = vmatprep.subr.mxu0 0.0
      %910 = vmatpush1.msra.mxu0 0.0
      %911 = vmatprep.subr.mxu0 0.0
      %912 = vmatpush1.msra.mxu0 0.0
      %913 = vmatprep.subr.mxu0 0.0
      %914 = vmatpush1.msra.mxu0 0.0
      %915 = vmatprep.subr.mxu0 0.0
      %916 = vmatpush1.msra.mxu0 0.0
      %917 = vmatprep.subr.mxu0 0.0
      %918 = vmatpush1.msra.mxu0 0.0
      %919 = vmatprep.subr.mxu0 0.0
      %920 = vmatpush1.msra.mxu0 0.0
      %921 = vmatprep.subr.mxu0 0.0
      %922 = vmatpush1.msra.mxu0 0.0
      %923 = vmatprep.subr.mxu0 0.0
      %924 = vmatpush1.msra.mxu0 0.0
      %925 = vmatprep.subr.mxu0 0.0
      %926 = vmatpush1.msra.mxu0 0.0
      %927 = vmatprep.subr.mxu0 0.0
      %928 = vmatpush1.msra.mxu0 0.0
      %929 = vmatprep.subr.mxu0 0.0
      %930 = vmatpush1.msra.mxu0 0.0
      %931 = vmatprep.subr.mxu0 0.0
      %932 = vmatpush1.msra.mxu0 0.0
      %933 = vmatprep.mubr.f32.mxu0 0.0
      %934 = vmatmul.mubr.f32.gmra.mrb[0].mxu0 %v103
      %v935 = vpop.f32.mrb[0].mxu0
      %v936 = vadd.f32 %v48, %v935
      %v937 = vpop.f32.mrb[0].mxu0
      %v938 = vadd.f32 %v48, %v937
      %939 = vmatprep.mubr.f32.mxu0 0.0
      %940 = vmatmul.mubr.f32.gmra.mrb[0].mxu0 %v106
      %v941 = vpop.f32.mrb[0].mxu0
      %v942 = vadd.f32 %v53, %v941
      %v943 = vpop.f32.mrb[0].mxu0
      %v944 = vadd.f32 %v53, %v943
      %945 = vmatprep.mubr.f32.mxu0 0.0
      %946 = vmatmul.mubr.f32.gmra.mrb[0].mxu0 %v109
      %v947 = vpop.f32.mrb[0].mxu0
      %v948 = vadd.f32 %v58, %v947
      %v949 = vpop.f32.mrb[0].mxu0
      %v950 = vadd.f32 %v58, %v949
      %951 = vmatprep.mubr.f32.mxu0 0.0
      %952 = vmatmul.mubr.f32.gmra.mrb[0].mxu0 %v112
      %v953 = vpop.f32.mrb[0].mxu0
      %v954 = vadd.f32 %v63, %v953
      %v955 = vpop.f32.mrb[0].mxu0
      %v956 = vadd.f32 %v63, %v955
      %957 = vmatprep.mubr.f32.mxu0 0.0
      %958 = vmatmul.mubr.f32.gmra.mrb[0].mxu0 %v115
      %v959 = vpop.f32.mrb[0].mxu0
      %v960 = vadd.f32 %v68, %v959
      %v961 = vpop.f32.mrb[0].mxu0
      %v962 = vadd.f32 %v68, %v961
      %963 = vmatprep.mubr.f32.mxu0 0.0
      %964 = vmatmul.mubr.f32.gmra.mrb[0].mxu0 %v118
      %v965 = vpop.f32.mrb[0].mxu0
      %v966 = vadd.f32 %v73, %v965
      %v967 = vpop.f32.mrb[0].mxu0
      %v968 = vadd.f32 %v73, %v967
      %969 = vmatprep.mubr.f32.mxu0 0.0
      %970 = vmatmul.mubr.f32.gmra.mrb[0].mxu0 %v121
      %v971 = vpop.f32.mrb[0].mxu0
      %v972 = vadd.f32 %v78, %v971
      %v973 = vpop.f32.mrb[0].mxu0
      %v974 = vadd.f32 %v78, %v973
      %975 = vmatprep.mubr.f32.mxu0 0.0
      %976 = vmatmul.mubr.f32.gmra.mrb[0].mxu0 %v124
      %v977 = vpop.f32.mrb[0].mxu0
      %v978 = vadd.f32 %v83, %v977
      %v979 = vpop.f32.mrb[0].mxu0
      %v980 = vadd.f32 %v83, %v979
      %981 = vdwg.mxu0
      %v982 = vtanh.pop %v823
      %v983 = vtanh.pop %v825
      %v984 = vtanh.pop %v936
      %v985 = vtanh.pop %v938
      %v986 = vtanh.pop %v829
      %v987 = vtanh.pop %v831
      %v988 = vtanh.pop %v942
      %v989 = vtanh.pop %v944
      %v990 = vtanh.pop %v835
      %v991 = vtanh.pop %v837
      %v992 = vtanh.pop %v948
      %v993 = vtanh.pop %v950
      %v994 = vtanh.pop %v841
      %v995 = vtanh.pop %v843
      %v996 = vtanh.pop %v954
      %v997 = vtanh.pop %v956
      %v998 = vtanh.pop %v847
      %v999 = vtanh.pop %v849
      %v1000 = vtanh.pop %v960
      %v1001 = vtanh.pop %v962
      %v1002 = vtanh.pop %v853
      %v1003 = vtanh.pop %v855
      %v1004 = vtanh.pop %v966
      %v1005 = vtanh.pop %v968
      %v1006 = vtanh.pop %v859
      %v1007 = vtanh.pop %v861
      %v1008 = vtanh.pop %v972
      %v1009 = vtanh.pop %v974
      %v1010 = vtanh.pop %v865
      %v1011 = vtanh.pop %v867
      %v1012 = vtanh.pop %v978
      %v1013 = vtanh.pop %v980
      %s1014 = sadd.s32 8, %s393
      %s1015 = smul.addr %s1014, 8
      %s1016 = scalar_lea.vmem [#allocation5], %s1015
      %1017 = vst [vmem:[%s1016] sm:$0xff] %v982
      %1018 = vst [vmem:[%s1016 + $0x8] sm:$0xff] %v983
      %1019 = vst [vmem:[%s1016 + $0x10] sm:$0xff] %v984
      %1020 = vst [vmem:[%s1016 + $0x18] sm:$0xff] %v985
      %1021 = vst [vmem:[%s1016 + $0x100] sm:$0xff] %v986
      %1022 = vst [vmem:[%s1016 + $0x108] sm:$0xff] %v987
      %1023 = vst [vmem:[%s1016 + $0x110] sm:$0xff] %v988
      %1024 = vst [vmem:[%s1016 + $0x118] sm:$0xff] %v989
      %1025 = vst [vmem:[%s1016 + $0x200] sm:$0xff] %v990
      %1026 = vst [vmem:[%s1016 + $0x208] sm:$0xff] %v991
      %1027 = vst [vmem:[%s1016 + $0x210] sm:$0xff] %v992
      %1028 = vst [vmem:[%s1016 + $0x218] sm:$0xff] %v993
      %1029 = vst [vmem:[%s1016 + $0x300] sm:$0xff] %v994
      %1030 = vst [vmem:[%s1016 + $0x308] sm:$0xff] %v995
      %1031 = vst [vmem:[%s1016 + $0x310] sm:$0xff] %v996
      %1032 = vst [vmem:[%s1016 + $0x318] sm:$0xff] %v997
      %1033 = vst [vmem:[%s1016 + $0x400] sm:$0xff] %v998
      %1034 = vst [vmem:[%s1016 + $0x408] sm:$0xff] %v999
      %1035 = vst [vmem:[%s1016 + $0x410] sm:$0xff] %v1000
      %1036 = vst [vmem:[%s1016 + $0x418] sm:$0xff] %v1001
      %1037 = vst [vmem:[%s1016 + $0x500] sm:$0xff] %v1002
      %1038 = vst [vmem:[%s1016 + $0x508] sm:$0xff] %v1003
      %1039 = vst [vmem:[%s1016 + $0x510] sm:$0xff] %v1004
      %1040 = vst [vmem:[%s1016 + $0x518] sm:$0xff] %v1005
      %1041 = vst [vmem:[%s1016 + $0x600] sm:$0xff] %v1006
      %1042 = vst [vmem:[%s1016 + $0x608] sm:$0xff] %v1007
      %1043 = vst [vmem:[%s1016 + $0x610] sm:$0xff] %v1008
      %1044 = vst [vmem:[%s1016 + $0x618] sm:$0xff] %v1009
      %1045 = vst [vmem:[%s1016 + $0x700] sm:$0xff] %v1010
      %1046 = vst [vmem:[%s1016 + $0x708] sm:$0xff] %v1011
      %1047 = vst [vmem:[%s1016 + $0x710] sm:$0xff] %v1012
      %1048 = vst [vmem:[%s1016 + $0x718] sm:$0xff] %v1013
      %s1049 = sadd.s32 12, %s91
      %s1050 = smul.addr %s1049, 4
      %s1051 = scalar_lea.vmem [#allocation2], %s1050
      %v1052 = vld [vmem:[%s1051] sm:$0xff]
      %v1053 = vld [vmem:[%s1051 + $0x8] sm:$0xff]
      %v1056 = vcombine.high %v1052, %v1052
      %v1057 = vcombine.high %v1053, %v1053
      %v1058 = vsel %vm126, %v1052, 0
      %v1060 = vsel %vm126, %v1056, 0
      %v1062 = vsel %vm126, %v1053, 0
      %v1064 = vsel %vm126, %v1057, 0
      %1066 = vmatprep.subr.mxu0 %v1060
      %1067 = vmatpush1.msra.mxu0 %v1058
      %1068 = vmatprep.subr.mxu0 0.0
      %1069 = vmatpush1.msra.mxu0 0.0
      %1070 = vmatprep.subr.mxu0 0.0
      %1071 = vmatpush1.msra.mxu0 0.0
      %1072 = vmatprep.subr.mxu0 0.0
      %1073 = vmatpush1.msra.mxu0 0.0
      %1074 = vmatprep.subr.mxu0 0.0
      %1075 = vmatpush1.msra.mxu0 0.0
      %1076 = vmatprep.subr.mxu0 0.0
      %1077 = vmatpush1.msra.mxu0 0.0
      %1078 = vmatprep.subr.mxu0 0.0
      %1079 = vmatpush1.msra.mxu0 0.0
      %1080 = vmatprep.subr.mxu0 0.0
      %1081 = vmatpush1.msra.mxu0 0.0
      %1082 = vmatprep.subr.mxu0 0.0
      %1083 = vmatpush1.msra.mxu0 0.0
      %1084 = vmatprep.subr.mxu0 0.0
      %1085 = vmatpush1.msra.mxu0 0.0
      %1086 = vmatprep.subr.mxu0 0.0
      %1087 = vmatpush1.msra.mxu0 0.0
      %1088 = vmatprep.subr.mxu0 0.0
      %1089 = vmatpush1.msra.mxu0 0.0
      %1090 = vmatprep.subr.mxu0 0.0
      %1091 = vmatpush1.msra.mxu0 0.0
      %1092 = vmatprep.subr.mxu0 0.0
      %1093 = vmatpush1.msra.mxu0 0.0
      %1094 = vmatprep.subr.mxu0 0.0
      %1095 = vmatpush1.msra.mxu0 0.0
      %1096 = vmatprep.subr.mxu0 0.0
      %1097 = vmatpush1.msra.mxu0 0.0
      %1098 = vmatprep.subr.mxu0 0.0
      %1099 = vmatpush1.msra.mxu0 0.0
      %1100 = vmatprep.subr.mxu0 0.0
      %1101 = vmatpush1.msra.mxu0 0.0
      %1102 = vmatprep.subr.mxu0 0.0
      %1103 = vmatpush1.msra.mxu0 0.0
      %1104 = vmatprep.subr.mxu0 0.0
      %1105 = vmatpush1.msra.mxu0 0.0
      %1106 = vmatprep.subr.mxu0 0.0
      %1107 = vmatpush1.msra.mxu0 0.0
      %1108 = vmatprep.subr.mxu0 0.0
      %1109 = vmatpush1.msra.mxu0 0.0
      %1110 = vmatprep.subr.mxu0 0.0
      %1111 = vmatpush1.msra.mxu0 0.0
      %1112 = vmatprep.subr.mxu0 0.0
      %1113 = vmatpush1.msra.mxu0 0.0
      %1114 = vmatprep.subr.mxu0 0.0
      %1115 = vmatpush1.msra.mxu0 0.0
      %1116 = vmatprep.subr.mxu0 0.0
      %1117 = vmatpush1.msra.mxu0 0.0
      %1118 = vmatprep.subr.mxu0 0.0
      %1119 = vmatpush1.msra.mxu0 0.0
      %1120 = vmatprep.subr.mxu0 0.0
      %1121 = vmatpush1.msra.mxu0 0.0
      %1122 = vmatprep.subr.mxu0 0.0
      %1123 = vmatpush1.msra.mxu0 0.0
      %1124 = vmatprep.subr.mxu0 0.0
      %1125 = vmatpush1.msra.mxu0 0.0
      %1126 = vmatprep.subr.mxu0 0.0
      %1127 = vmatpush1.msra.mxu0 0.0
      %1128 = vmatprep.subr.mxu0 0.0
      %1129 = vmatpush1.msra.mxu0 0.0
      %1130 = vmatprep.mubr.f32.mxu0 0.0
      %1131 = vmatmul.mubr.f32.gmra.mrb[0].mxu0 %v103
      %v1132 = vpop.f32.mrb[0].mxu0
      %v1133 = vadd.f32 %v48, %v1132
      %v1134 = vpop.f32.mrb[0].mxu0
      %v1135 = vadd.f32 %v48, %v1134
      %1136 = vmatprep.mubr.f32.mxu0 0.0
      %1137 = vmatmul.mubr.f32.gmra.mrb[0].mxu0 %v106
      %v1138 = vpop.f32.mrb[0].mxu0
      %v1139 = vadd.f32 %v53, %v1138
      %v1140 = vpop.f32.mrb[0].mxu0
      %v1141 = vadd.f32 %v53, %v1140
      %1142 = vmatprep.mubr.f32.mxu0 0.0
      %1143 = vmatmul.mubr.f32.gmra.mrb[0].mxu0 %v109
      %v1144 = vpop.f32.mrb[0].mxu0
      %v1145 = vadd.f32 %v58, %v1144
      %v1146 = vpop.f32.mrb[0].mxu0
      %v1147 = vadd.f32 %v58, %v1146
      %1148 = vmatprep.mubr.f32.mxu0 0.0
      %1149 = vmatmul.mubr.f32.gmra.mrb[0].mxu0 %v112
      %v1150 = vpop.f32.mrb[0].mxu0
      %v1151 = vadd.f32 %v63, %v1150
      %v1152 = vpop.f32.mrb[0].mxu0
      %v1153 = vadd.f32 %v63, %v1152
      %1154 = vmatprep.mubr.f32.mxu0 0.0
      %1155 = vmatmul.mubr.f32.gmra.mrb[0].mxu0 %v115
      %v1156 = vpop.f32.mrb[0].mxu0
      %v1157 = vadd.f32 %v68, %v1156
      %v1158 = vpop.f32.mrb[0].mxu0
      %v1159 = vadd.f32 %v68, %v1158
      %1160 = vmatprep.mubr.f32.mxu0 0.0
      %1161 = vmatmul.mubr.f32.gmra.mrb[0].mxu0 %v118
      %v1162 = vpop.f32.mrb[0].mxu0
      %v1163 = vadd.f32 %v73, %v1162
      %v1164 = vpop.f32.mrb[0].mxu0
      %v1165 = vadd.f32 %v73, %v1164
      %1166 = vmatprep.mubr.f32.mxu0 0.0
      %1167 = vmatmul.mubr.f32.gmra.mrb[0].mxu0 %v121
      %v1168 = vpop.f32.mrb[0].mxu0
      %v1169 = vadd.f32 %v78, %v1168
      %v1170 = vpop.f32.mrb[0].mxu0
      %v1171 = vadd.f32 %v78, %v1170
      %1172 = vmatprep.mubr.f32.mxu0 0.0
      %1173 = vmatmul.mubr.f32.gmra.mrb[0].mxu0 %v124
      %v1174 = vpop.f32.mrb[0].mxu0
      %v1175 = vadd.f32 %v83, %v1174
      %v1176 = vpop.f32.mrb[0].mxu0
      %v1177 = vadd.f32 %v83, %v1176
      %1178 = vdwg.mxu0
      %1179 = vmatprep.subr.mxu0 %v1064
      %1180 = vmatpush1.msra.mxu0 %v1062
      %1181 = vmatprep.subr.mxu0 0.0
      %1182 = vmatpush1.msra.mxu0 0.0
      %1183 = vmatprep.subr.mxu0 0.0
      %1184 = vmatpush1.msra.mxu0 0.0
      %1185 = vmatprep.subr.mxu0 0.0
      %1186 = vmatpush1.msra.mxu0 0.0
      %1187 = vmatprep.subr.mxu0 0.0
      %1188 = vmatpush1.msra.mxu0 0.0
      %1189 = vmatprep.subr.mxu0 0.0
      %1190 = vmatpush1.msra.mxu0 0.0
      %1191 = vmatprep.subr.mxu0 0.0
      %1192 = vmatpush1.msra.mxu0 0.0
      %1193 = vmatprep.subr.mxu0 0.0
      %1194 = vmatpush1.msra.mxu0 0.0
      %1195 = vmatprep.subr.mxu0 0.0
      %1196 = vmatpush1.msra.mxu0 0.0
      %1197 = vmatprep.subr.mxu0 0.0
      %1198 = vmatpush1.msra.mxu0 0.0
      %1199 = vmatprep.subr.mxu0 0.0
      %1200 = vmatpush1.msra.mxu0 0.0
      %1201 = vmatprep.subr.mxu0 0.0
      %1202 = vmatpush1.msra.mxu0 0.0
      %1203 = vmatprep.subr.mxu0 0.0
      %1204 = vmatpush1.msra.mxu0 0.0
      %1205 = vmatprep.subr.mxu0 0.0
      %1206 = vmatpush1.msra.mxu0 0.0
      %1207 = vmatprep.subr.mxu0 0.0
      %1208 = vmatpush1.msra.mxu0 0.0
      %1209 = vmatprep.subr.mxu0 0.0
      %1210 = vmatpush1.msra.mxu0 0.0
      %1211 = vmatprep.subr.mxu0 0.0
      %1212 = vmatpush1.msra.mxu0 0.0
      %1213 = vmatprep.subr.mxu0 0.0
      %1214 = vmatpush1.msra.mxu0 0.0
      %1215 = vmatprep.subr.mxu0 0.0
      %1216 = vmatpush1.msra.mxu0 0.0
      %1217 = vmatprep.subr.mxu0 0.0
      %1218 = vmatpush1.msra.mxu0 0.0
      %1219 = vmatprep.subr.mxu0 0.0
      %1220 = vmatpush1.msra.mxu0 0.0
      %1221 = vmatprep.subr.mxu0 0.0
      %1222 = vmatpush1.msra.mxu0 0.0
      %1223 = vmatprep.subr.mxu0 0.0
      %1224 = vmatpush1.msra.mxu0 0.0
      %1225 = vmatprep.subr.mxu0 0.0
      %1226 = vmatpush1.msra.mxu0 0.0
      %1227 = vmatprep.subr.mxu0 0.0
      %1228 = vmatpush1.msra.mxu0 0.0
      %1229 = vmatprep.subr.mxu0 0.0
      %1230 = vmatpush1.msra.mxu0 0.0
      %1231 = vmatprep.subr.mxu0 0.0
      %1232 = vmatpush1.msra.mxu0 0.0
      %1233 = vmatprep.subr.mxu0 0.0
      %1234 = vmatpush1.msra.mxu0 0.0
      %1235 = vmatprep.subr.mxu0 0.0
      %1236 = vmatpush1.msra.mxu0 0.0
      %1237 = vmatprep.subr.mxu0 0.0
      %1238 = vmatpush1.msra.mxu0 0.0
      %1239 = vmatprep.subr.mxu0 0.0
      %1240 = vmatpush1.msra.mxu0 0.0
      %1241 = vmatprep.subr.mxu0 0.0
      %1242 = vmatpush1.msra.mxu0 0.0
      %1243 = vmatprep.mubr.f32.mxu0 0.0
      %1244 = vmatmul.mubr.f32.gmra.mrb[0].mxu0 %v103
      %v1245 = vpop.f32.mrb[0].mxu0
      %v1246 = vadd.f32 %v48, %v1245
      %v1247 = vpop.f32.mrb[0].mxu0
      %v1248 = vadd.f32 %v48, %v1247
      %1249 = vmatprep.mubr.f32.mxu0 0.0
      %1250 = vmatmul.mubr.f32.gmra.mrb[0].mxu0 %v106
      %v1251 = vpop.f32.mrb[0].mxu0
      %v1252 = vadd.f32 %v53, %v1251
      %v1253 = vpop.f32.mrb[0].mxu0
      %v1254 = vadd.f32 %v53, %v1253
      %1255 = vmatprep.mubr.f32.mxu0 0.0
      %1256 = vmatmul.mubr.f32.gmra.mrb[0].mxu0 %v109
      %v1257 = vpop.f32.mrb[0].mxu0
      %v1258 = vadd.f32 %v58, %v1257
      %v1259 = vpop.f32.mrb[0].mxu0
      %v1260 = vadd.f32 %v58, %v1259
      %1261 = vmatprep.mubr.f32.mxu0 0.0
      %1262 = vmatmul.mubr.f32.gmra.mrb[0].mxu0 %v112
      %v1263 = vpop.f32.mrb[0].mxu0
      %v1264 = vadd.f32 %v63, %v1263
      %v1265 = vpop.f32.mrb[0].mxu0
      %v1266 = vadd.f32 %v63, %v1265
      %1267 = vmatprep.mubr.f32.mxu0 0.0
      %1268 = vmatmul.mubr.f32.gmra.mrb[0].mxu0 %v115
      %v1269 = vpop.f32.mrb[0].mxu0
      %v1270 = vadd.f32 %v68, %v1269
      %v1271 = vpop.f32.mrb[0].mxu0
      %v1272 = vadd.f32 %v68, %v1271
      %1273 = vmatprep.mubr.f32.mxu0 0.0
      %1274 = vmatmul.mubr.f32.gmra.mrb[0].mxu0 %v118
      %v1275 = vpop.f32.mrb[0].mxu0
      %v1276 = vadd.f32 %v73, %v1275
      %v1277 = vpop.f32.mrb[0].mxu0
      %v1278 = vadd.f32 %v73, %v1277
      %1279 = vmatprep.mubr.f32.mxu0 0.0
      %1280 = vmatmul.mubr.f32.gmra.mrb[0].mxu0 %v121
      %v1281 = vpop.f32.mrb[0].mxu0
      %v1282 = vadd.f32 %v78, %v1281
      %v1283 = vpop.f32.mrb[0].mxu0
      %v1284 = vadd.f32 %v78, %v1283
      %1285 = vmatprep.mubr.f32.mxu0 0.0
      %1286 = vmatmul.mubr.f32.gmra.mrb[0].mxu0 %v124
      %v1287 = vpop.f32.mrb[0].mxu0
      %v1288 = vadd.f32 %v83, %v1287
      %v1289 = vpop.f32.mrb[0].mxu0
      %v1290 = vadd.f32 %v83, %v1289
      %1291 = vdwg.mxu0
      %v1292 = vtanh.pop %v1133
      %v1293 = vtanh.pop %v1135
      %v1294 = vtanh.pop %v1246
      %v1295 = vtanh.pop %v1248
      %v1296 = vtanh.pop %v1139
      %v1297 = vtanh.pop %v1141
      %v1298 = vtanh.pop %v1252
      %v1299 = vtanh.pop %v1254
      %v1300 = vtanh.pop %v1145
      %v1301 = vtanh.pop %v1147
      %v1302 = vtanh.pop %v1258
      %v1303 = vtanh.pop %v1260
      %v1304 = vtanh.pop %v1151
      %v1305 = vtanh.pop %v1153
      %v1306 = vtanh.pop %v1264
      %v1307 = vtanh.pop %v1266
      %v1308 = vtanh.pop %v1157
      %v1309 = vtanh.pop %v1159
      %v1310 = vtanh.pop %v1270
      %v1311 = vtanh.pop %v1272
      %v1312 = vtanh.pop %v1163
      %v1313 = vtanh.pop %v1165
      %v1314 = vtanh.pop %v1276
      %v1315 = vtanh.pop %v1278
      %v1316 = vtanh.pop %v1169
      %v1317 = vtanh.pop %v1171
      %v1318 = vtanh.pop %v1282
      %v1319 = vtanh.pop %v1284
      %v1320 = vtanh.pop %v1175
      %v1321 = vtanh.pop %v1177
      %v1322 = vtanh.pop %v1288
      %v1323 = vtanh.pop %v1290
      %s1324 = sadd.s32 12, %s393
      %s1325 = smul.addr %s1324, 8
      %s1326 = scalar_lea.vmem [#allocation5], %s1325
      %1327 = vst [vmem:[%s1326] sm:$0xff] %v1292
      %1328 = vst [vmem:[%s1326 + $0x8] sm:$0xff] %v1293
      %1329 = vst [vmem:[%s1326 + $0x10] sm:$0xff] %v1294
      %1330 = vst [vmem:[%s1326 + $0x18] sm:$0xff] %v1295
      %1331 = vst [vmem:[%s1326 + $0x100] sm:$0xff] %v1296
      %1332 = vst [vmem:[%s1326 + $0x108] sm:$0xff] %v1297
      %1333 = vst [vmem:[%s1326 + $0x110] sm:$0xff] %v1298
      %1334 = vst [vmem:[%s1326 + $0x118] sm:$0xff] %v1299
      %1335 = vst [vmem:[%s1326 + $0x200] sm:$0xff] %v1300
      %1336 = vst [vmem:[%s1326 + $0x208] sm:$0xff] %v1301
      %1337 = vst [vmem:[%s1326 + $0x210] sm:$0xff] %v1302
      %1338 = vst [vmem:[%s1326 + $0x218] sm:$0xff] %v1303
      %1339 = vst [vmem:[%s1326 + $0x300] sm:$0xff] %v1304
      %1340 = vst [vmem:[%s1326 + $0x308] sm:$0xff] %v1305
      %1341 = vst [vmem:[%s1326 + $0x310] sm:$0xff] %v1306
      %1342 = vst [vmem:[%s1326 + $0x318] sm:$0xff] %v1307
      %1343 = vst [vmem:[%s1326 + $0x400] sm:$0xff] %v1308
      %1344 = vst [vmem:[%s1326 + $0x408] sm:$0xff] %v1309
      %1345 = vst [vmem:[%s1326 + $0x410] sm:$0xff] %v1310
      %1346 = vst [vmem:[%s1326 + $0x418] sm:$0xff] %v1311
      %1347 = vst [vmem:[%s1326 + $0x500] sm:$0xff] %v1312
      %1348 = vst [vmem:[%s1326 + $0x508] sm:$0xff] %v1313
      %1349 = vst [vmem:[%s1326 + $0x510] sm:$0xff] %v1314
      %1350 = vst [vmem:[%s1326 + $0x518] sm:$0xff] %v1315
      %1351 = vst [vmem:[%s1326 + $0x600] sm:$0xff] %v1316
      %1352 = vst [vmem:[%s1326 + $0x608] sm:$0xff] %v1317
      %1353 = vst [vmem:[%s1326 + $0x610] sm:$0xff] %v1318
      %1354 = vst [vmem:[%s1326 + $0x618] sm:$0xff] %v1319
      %1355 = vst [vmem:[%s1326 + $0x700] sm:$0xff] %v1320
      %1356 = vst [vmem:[%s1326 + $0x708] sm:$0xff] %v1321
      %1357 = vst [vmem:[%s1326 + $0x710] sm:$0xff] %v1322
      %1358 = vst [vmem:[%s1326 + $0x718] sm:$0xff] %v1323
      %s1359 = sadd.s32 16, %s91
      %s1360 = smul.addr %s1359, 4
      %s1361 = scalar_lea.vmem [#allocation2], %s1360
      %v1362 = vld [vmem:[%s1361] sm:$0xff]
      %v1363 = vld [vmem:[%s1361 + $0x8] sm:$0xff]
      %v1366 = vcombine.high %v1362, %v1362
      %v1367 = vcombine.high %v1363, %v1363
      %v1368 = vsel %vm126, %v1362, 0
      %v1370 = vsel %vm126, %v1366, 0
      %v1372 = vsel %vm126, %v1363, 0
      %v1374 = vsel %vm126, %v1367, 0
      %1376 = vmatprep.subr.mxu0 %v1370
      %1377 = vmatpush1.msra.mxu0 %v1368
      %1378 = vmatprep.subr.mxu0 0.0
      %1379 = vmatpush1.msra.mxu0 0.0
      %1380 = vmatprep.subr.mxu0 0.0
      %1381 = vmatpush1.msra.mxu0 0.0
      %1382 = vmatprep.subr.mxu0 0.0
      %1383 = vmatpush1.msra.mxu0 0.0
      %1384 = vmatprep.subr.mxu0 0.0
      %1385 = vmatpush1.msra.mxu0 0.0
      %1386 = vmatprep.subr.mxu0 0.0
      %1387 = vmatpush1.msra.mxu0 0.0
      %1388 = vmatprep.subr.mxu0 0.0
      %1389 = vmatpush1.msra.mxu0 0.0
      %1390 = vmatprep.subr.mxu0 0.0
      %1391 = vmatpush1.msra.mxu0 0.0
      %1392 = vmatprep.subr.mxu0 0.0
      %1393 = vmatpush1.msra.mxu0 0.0
      %1394 = vmatprep.subr.mxu0 0.0
      %1395 = vmatpush1.msra.mxu0 0.0
      %1396 = vmatprep.subr.mxu0 0.0
      %1397 = vmatpush1.msra.mxu0 0.0
      %1398 = vmatprep.subr.mxu0 0.0
      %1399 = vmatpush1.msra.mxu0 0.0
      %1400 = vmatprep.subr.mxu0 0.0
      %1401 = vmatpush1.msra.mxu0 0.0
      %1402 = vmatprep.subr.mxu0 0.0
      %1403 = vmatpush1.msra.mxu0 0.0
      %1404 = vmatprep.subr.mxu0 0.0
      %1405 = vmatpush1.msra.mxu0 0.0
      %1406 = vmatprep.subr.mxu0 0.0
      %1407 = vmatpush1.msra.mxu0 0.0
      %1408 = vmatprep.subr.mxu0 0.0
      %1409 = vmatpush1.msra.mxu0 0.0
      %1410 = vmatprep.subr.mxu0 0.0
      %1411 = vmatpush1.msra.mxu0 0.0
      %1412 = vmatprep.subr.mxu0 0.0
      %1413 = vmatpush1.msra.mxu0 0.0
      %1414 = vmatprep.subr.mxu0 0.0
      %1415 = vmatpush1.msra.mxu0 0.0
      %1416 = vmatprep.subr.mxu0 0.0
      %1417 = vmatpush1.msra.mxu0 0.0
      %1418 = vmatprep.subr.mxu0 0.0
      %1419 = vmatpush1.msra.mxu0 0.0
      %1420 = vmatprep.subr.mxu0 0.0
      %1421 = vmatpush1.msra.mxu0 0.0
      %1422 = vmatprep.subr.mxu0 0.0
      %1423 = vmatpush1.msra.mxu0 0.0
      %1424 = vmatprep.subr.mxu0 0.0
      %1425 = vmatpush1.msra.mxu0 0.0
      %1426 = vmatprep.subr.mxu0 0.0
      %1427 = vmatpush1.msra.mxu0 0.0
      %1428 = vmatprep.subr.mxu0 0.0
      %1429 = vmatpush1.msra.mxu0 0.0
      %1430 = vmatprep.subr.mxu0 0.0
      %1431 = vmatpush1.msra.mxu0 0.0
      %1432 = vmatprep.subr.mxu0 0.0
      %1433 = vmatpush1.msra.mxu0 0.0
      %1434 = vmatprep.subr.mxu0 0.0
      %1435 = vmatpush1.msra.mxu0 0.0
      %1436 = vmatprep.subr.mxu0 0.0
      %1437 = vmatpush1.msra.mxu0 0.0
      %1438 = vmatprep.subr.mxu0 0.0
      %1439 = vmatpush1.msra.mxu0 0.0
      %1440 = vmatprep.mubr.f32.mxu0 0.0
      %1441 = vmatmul.mubr.f32.gmra.mrb[0].mxu0 %v103
      %v1442 = vpop.f32.mrb[0].mxu0
      %v1443 = vadd.f32 %v48, %v1442
      %v1444 = vpop.f32.mrb[0].mxu0
      %v1445 = vadd.f32 %v48, %v1444
      %1446 = vmatprep.mubr.f32.mxu0 0.0
      %1447 = vmatmul.mubr.f32.gmra.mrb[0].mxu0 %v106
      %v1448 = vpop.f32.mrb[0].mxu0
      %v1449 = vadd.f32 %v53, %v1448
      %v1450 = vpop.f32.mrb[0].mxu0
      %v1451 = vadd.f32 %v53, %v1450
      %1452 = vmatprep.mubr.f32.mxu0 0.0
      %1453 = vmatmul.mubr.f32.gmra.mrb[0].mxu0 %v109
      %v1454 = vpop.f32.mrb[0].mxu0
      %v1455 = vadd.f32 %v58, %v1454
      %v1456 = vpop.f32.mrb[0].mxu0
      %v1457 = vadd.f32 %v58, %v1456
      %1458 = vmatprep.mubr.f32.mxu0 0.0
      %1459 = vmatmul.mubr.f32.gmra.mrb[0].mxu0 %v112
      %v1460 = vpop.f32.mrb[0].mxu0
      %v1461 = vadd.f32 %v63, %v1460
      %v1462 = vpop.f32.mrb[0].mxu0
      %v1463 = vadd.f32 %v63, %v1462
      %1464 = vmatprep.mubr.f32.mxu0 0.0
      %1465 = vmatmul.mubr.f32.gmra.mrb[0].mxu0 %v115
      %v1466 = vpop.f32.mrb[0].mxu0
      %v1467 = vadd.f32 %v68, %v1466
      %v1468 = vpop.f32.mrb[0].mxu0
      %v1469 = vadd.f32 %v68, %v1468
      %1470 = vmatprep.mubr.f32.mxu0 0.0
      %1471 = vmatmul.mubr.f32.gmra.mrb[0].mxu0 %v118
      %v1472 = vpop.f32.mrb[0].mxu0
      %v1473 = vadd.f32 %v73, %v1472
      %v1474 = vpop.f32.mrb[0].mxu0
      %v1475 = vadd.f32 %v73, %v1474
      %1476 = vmatprep.mubr.f32.mxu0 0.0
      %1477 = vmatmul.mubr.f32.gmra.mrb[0].mxu0 %v121
      %v1478 = vpop.f32.mrb[0].mxu0
      %v1479 = vadd.f32 %v78, %v1478
      %v1480 = vpop.f32.mrb[0].mxu0
      %v1481 = vadd.f32 %v78, %v1480
      %1482 = vmatprep.mubr.f32.mxu0 0.0
      %1483 = vmatmul.mubr.f32.gmra.mrb[0].mxu0 %v124
      %v1484 = vpop.f32.mrb[0].mxu0
      %v1485 = vadd.f32 %v83, %v1484
      %v1486 = vpop.f32.mrb[0].mxu0
      %v1487 = vadd.f32 %v83, %v1486
      %1488 = vdwg.mxu0
      %1489 = vmatprep.subr.mxu0 %v1374
      %1490 = vmatpush1.msra.mxu0 %v1372
      %1491 = vmatprep.subr.mxu0 0.0
      %1492 = vmatpush1.msra.mxu0 0.0
      %1493 = vmatprep.subr.mxu0 0.0
      %1494 = vmatpush1.msra.mxu0 0.0
      %1495 = vmatprep.subr.mxu0 0.0
      %1496 = vmatpush1.msra.mxu0 0.0
      %1497 = vmatprep.subr.mxu0 0.0
      %1498 = vmatpush1.msra.mxu0 0.0
      %1499 = vmatprep.subr.mxu0 0.0
      %1500 = vmatpush1.msra.mxu0 0.0
      %1501 = vmatprep.subr.mxu0 0.0
      %1502 = vmatpush1.msra.mxu0 0.0
      %1503 = vmatprep.subr.mxu0 0.0
      %1504 = vmatpush1.msra.mxu0 0.0
      %1505 = vmatprep.subr.mxu0 0.0
      %1506 = vmatpush1.msra.mxu0 0.0
      %1507 = vmatprep.subr.mxu0 0.0
      %1508 = vmatpush1.msra.mxu0 0.0
      %1509 = vmatprep.subr.mxu0 0.0
      %1510 = vmatpush1.msra.mxu0 0.0
      %1511 = vmatprep.subr.mxu0 0.0
      %1512 = vmatpush1.msra.mxu0 0.0
      %1513 = vmatprep.subr.mxu0 0.0
      %1514 = vmatpush1.msra.mxu0 0.0
      %1515 = vmatprep.subr.mxu0 0.0
      %1516 = vmatpush1.msra.mxu0 0.0
      %1517 = vmatprep.subr.mxu0 0.0
      %1518 = vmatpush1.msra.mxu0 0.0
      %1519 = vmatprep.subr.mxu0 0.0
      %1520 = vmatpush1.msra.mxu0 0.0
      %1521 = vmatprep.subr.mxu0 0.0
      %1522 = vmatpush1.msra.mxu0 0.0
      %1523 = vmatprep.subr.mxu0 0.0
      %1524 = vmatpush1.msra.mxu0 0.0
      %1525 = vmatprep.subr.mxu0 0.0
      %1526 = vmatpush1.msra.mxu0 0.0
      %1527 = vmatprep.subr.mxu0 0.0
      %1528 = vmatpush1.msra.mxu0 0.0
      %1529 = vmatprep.subr.mxu0 0.0
      %1530 = vmatpush1.msra.mxu0 0.0
      %1531 = vmatprep.subr.mxu0 0.0
      %1532 = vmatpush1.msra.mxu0 0.0
      %1533 = vmatprep.subr.mxu0 0.0
      %1534 = vmatpush1.msra.mxu0 0.0
      %1535 = vmatprep.subr.mxu0 0.0
      %1536 = vmatpush1.msra.mxu0 0.0
      %1537 = vmatprep.subr.mxu0 0.0
      %1538 = vmatpush1.msra.mxu0 0.0
      %1539 = vmatprep.subr.mxu0 0.0
      %1540 = vmatpush1.msra.mxu0 0.0
      %1541 = vmatprep.subr.mxu0 0.0
      %1542 = vmatpush1.msra.mxu0 0.0
      %1543 = vmatprep.subr.mxu0 0.0
      %1544 = vmatpush1.msra.mxu0 0.0
      %1545 = vmatprep.subr.mxu0 0.0
      %1546 = vmatpush1.msra.mxu0 0.0
      %1547 = vmatprep.subr.mxu0 0.0
      %1548 = vmatpush1.msra.mxu0 0.0
      %1549 = vmatprep.subr.mxu0 0.0
      %1550 = vmatpush1.msra.mxu0 0.0
      %1551 = vmatprep.subr.mxu0 0.0
      %1552 = vmatpush1.msra.mxu0 0.0
      %1553 = vmatprep.mubr.f32.mxu0 0.0
      %1554 = vmatmul.mubr.f32.gmra.mrb[0].mxu0 %v103
      %v1555 = vpop.f32.mrb[0].mxu0
      %v1556 = vadd.f32 %v48, %v1555
      %v1557 = vpop.f32.mrb[0].mxu0
      %v1558 = vadd.f32 %v48, %v1557
      %1559 = vmatprep.mubr.f32.mxu0 0.0
      %1560 = vmatmul.mubr.f32.gmra.mrb[0].mxu0 %v106
      %v1561 = vpop.f32.mrb[0].mxu0
      %v1562 = vadd.f32 %v53, %v1561
      %v1563 = vpop.f32.mrb[0].mxu0
      %v1564 = vadd.f32 %v53, %v1563
      %1565 = vmatprep.mubr.f32.mxu0 0.0
      %1566 = vmatmul.mubr.f32.gmra.mrb[0].mxu0 %v109
      %v1567 = vpop.f32.mrb[0].mxu0
      %v1568 = vadd.f32 %v58, %v1567
      %v1569 = vpop.f32.mrb[0].mxu0
      %v1570 = vadd.f32 %v58, %v1569
      %1571 = vmatprep.mubr.f32.mxu0 0.0
      %1572 = vmatmul.mubr.f32.gmra.mrb[0].mxu0 %v112
      %v1573 = vpop.f32.mrb[0].mxu0
      %v1574 = vadd.f32 %v63, %v1573
      %v1575 = vpop.f32.mrb[0].mxu0
      %v1576 = vadd.f32 %v63, %v1575
      %1577 = vmatprep.mubr.f32.mxu0 0.0
      %1578 = vmatmul.mubr.f32.gmra.mrb[0].mxu0 %v115
      %v1579 = vpop.f32.mrb[0].mxu0
      %v1580 = vadd.f32 %v68, %v1579
      %v1581 = vpop.f32.mrb[0].mxu0
      %v1582 = vadd.f32 %v68, %v1581
      %1583 = vmatprep.mubr.f32.mxu0 0.0
      %1584 = vmatmul.mubr.f32.gmra.mrb[0].mxu0 %v118
      %v1585 = vpop.f32.mrb[0].mxu0
      %v1586 = vadd.f32 %v73, %v1585
      %v1587 = vpop.f32.mrb[0].mxu0
      %v1588 = vadd.f32 %v73, %v1587
      %1589 = vmatprep.mubr.f32.mxu0 0.0
      %1590 = vmatmul.mubr.f32.gmra.mrb[0].mxu0 %v121
      %v1591 = vpop.f32.mrb[0].mxu0
      %v1592 = vadd.f32 %v78, %v1591
      %v1593 = vpop.f32.mrb[0].mxu0
      %v1594 = vadd.f32 %v78, %v1593
      %1595 = vmatprep.mubr.f32.mxu0 0.0
      %1596 = vmatmul.mubr.f32.gmra.mrb[0].mxu0 %v124
      %v1597 = vpop.f32.mrb[0].mxu0
      %v1598 = vadd.f32 %v83, %v1597
      %v1599 = vpop.f32.mrb[0].mxu0
      %v1600 = vadd.f32 %v83, %v1599
      %1601 = vdwg.mxu0
      %v1602 = vtanh.pop %v1443
      %v1603 = vtanh.pop %v1445
      %v1604 = vtanh.pop %v1556
      %v1605 = vtanh.pop %v1558
      %v1606 = vtanh.pop %v1449
      %v1607 = vtanh.pop %v1451
      %v1608 = vtanh.pop %v1562
      %v1609 = vtanh.pop %v1564
      %v1610 = vtanh.pop %v1455
      %v1611 = vtanh.pop %v1457
      %v1612 = vtanh.pop %v1568
      %v1613 = vtanh.pop %v1570
      %v1614 = vtanh.pop %v1461
      %v1615 = vtanh.pop %v1463
      %v1616 = vtanh.pop %v1574
      %v1617 = vtanh.pop %v1576
      %v1618 = vtanh.pop %v1467
      %v1619 = vtanh.pop %v1469
      %v1620 = vtanh.pop %v1580
      %v1621 = vtanh.pop %v1582
      %v1622 = vtanh.pop %v1473
      %v1623 = vtanh.pop %v1475
      %v1624 = vtanh.pop %v1586
      %v1625 = vtanh.pop %v1588
      %v1626 = vtanh.pop %v1479
      %v1627 = vtanh.pop %v1481
      %v1628 = vtanh.pop %v1592
      %v1629 = vtanh.pop %v1594
      %v1630 = vtanh.pop %v1485
      %v1631 = vtanh.pop %v1487
      %v1632 = vtanh.pop %v1598
      %v1633 = vtanh.pop %v1600
      %s1634 = sadd.s32 16, %s393
      %s1635 = smul.addr %s1634, 8
      %s1636 = scalar_lea.vmem [#allocation5], %s1635
      %1637 = vst [vmem:[%s1636] sm:$0xff] %v1602
      %1638 = vst [vmem:[%s1636 + $0x8] sm:$0xff] %v1603
      %1639 = vst [vmem:[%s1636 + $0x10] sm:$0xff] %v1604
      %1640 = vst [vmem:[%s1636 + $0x18] sm:$0xff] %v1605
      %1641 = vst [vmem:[%s1636 + $0x100] sm:$0xff] %v1606
      %1642 = vst [vmem:[%s1636 + $0x108] sm:$0xff] %v1607
      %1643 = vst [vmem:[%s1636 + $0x110] sm:$0xff] %v1608
      %1644 = vst [vmem:[%s1636 + $0x118] sm:$0xff] %v1609
      %1645 = vst [vmem:[%s1636 + $0x200] sm:$0xff] %v1610
      %1646 = vst [vmem:[%s1636 + $0x208] sm:$0xff] %v1611
      %1647 = vst [vmem:[%s1636 + $0x210] sm:$0xff] %v1612
      %1648 = vst [vmem:[%s1636 + $0x218] sm:$0xff] %v1613
      %1649 = vst [vmem:[%s1636 + $0x300] sm:$0xff] %v1614
      %1650 = vst [vmem:[%s1636 + $0x308] sm:$0xff] %v1615
      %1651 = vst [vmem:[%s1636 + $0x310] sm:$0xff] %v1616
      %1652 = vst [vmem:[%s1636 + $0x318] sm:$0xff] %v1617
      %1653 = vst [vmem:[%s1636 + $0x400] sm:$0xff] %v1618
      %1654 = vst [vmem:[%s1636 + $0x408] sm:$0xff] %v1619
      %1655 = vst [vmem:[%s1636 + $0x410] sm:$0xff] %v1620
      %1656 = vst [vmem:[%s1636 + $0x418] sm:$0xff] %v1621
      %1657 = vst [vmem:[%s1636 + $0x500] sm:$0xff] %v1622
      %1658 = vst [vmem:[%s1636 + $0x508] sm:$0xff] %v1623
      %1659 = vst [vmem:[%s1636 + $0x510] sm:$0xff] %v1624
      %1660 = vst [vmem:[%s1636 + $0x518] sm:$0xff] %v1625
      %1661 = vst [vmem:[%s1636 + $0x600] sm:$0xff] %v1626
      %1662 = vst [vmem:[%s1636 + $0x608] sm:$0xff] %v1627
      %1663 = vst [vmem:[%s1636 + $0x610] sm:$0xff] %v1628
      %1664 = vst [vmem:[%s1636 + $0x618] sm:$0xff] %v1629
      %1665 = vst [vmem:[%s1636 + $0x700] sm:$0xff] %v1630
      %1666 = vst [vmem:[%s1636 + $0x708] sm:$0xff] %v1631
      %1667 = vst [vmem:[%s1636 + $0x710] sm:$0xff] %v1632
      %1668 = vst [vmem:[%s1636 + $0x718] sm:$0xff] %v1633
      %s1669 = sadd.s32 20, %s91
      %s1670 = smul.addr %s1669, 4
      %s1671 = scalar_lea.vmem [#allocation2], %s1670
      %v1672 = vld [vmem:[%s1671] sm:$0xff]
      %v1673 = vld [vmem:[%s1671 + $0x8] sm:$0xff]
      %v1676 = vcombine.high %v1672, %v1672
      %v1677 = vcombine.high %v1673, %v1673
      %v1678 = vsel %vm126, %v1672, 0
      %v1680 = vsel %vm126, %v1676, 0
      %v1682 = vsel %vm126, %v1673, 0
      %v1684 = vsel %vm126, %v1677, 0
      %1686 = vmatprep.subr.mxu0 %v1680
      %1687 = vmatpush1.msra.mxu0 %v1678
      %1688 = vmatprep.subr.mxu0 0.0
      %1689 = vmatpush1.msra.mxu0 0.0
      %1690 = vmatprep.subr.mxu0 0.0
      %1691 = vmatpush1.msra.mxu0 0.0
      %1692 = vmatprep.subr.mxu0 0.0
      %1693 = vmatpush1.msra.mxu0 0.0
      %1694 = vmatprep.subr.mxu0 0.0
      %1695 = vmatpush1.msra.mxu0 0.0
      %1696 = vmatprep.subr.mxu0 0.0
      %1697 = vmatpush1.msra.mxu0 0.0
      %1698 = vmatprep.subr.mxu0 0.0
      %1699 = vmatpush1.msra.mxu0 0.0
      %1700 = vmatprep.subr.mxu0 0.0
      %1701 = vmatpush1.msra.mxu0 0.0
      %1702 = vmatprep.subr.mxu0 0.0
      %1703 = vmatpush1.msra.mxu0 0.0
      %1704 = vmatprep.subr.mxu0 0.0
      %1705 = vmatpush1.msra.mxu0 0.0
      %1706 = vmatprep.subr.mxu0 0.0
      %1707 = vmatpush1.msra.mxu0 0.0
      %1708 = vmatprep.subr.mxu0 0.0
      %1709 = vmatpush1.msra.mxu0 0.0
      %1710 = vmatprep.subr.mxu0 0.0
      %1711 = vmatpush1.msra.mxu0 0.0
      %1712 = vmatprep.subr.mxu0 0.0
      %1713 = vmatpush1.msra.mxu0 0.0
      %1714 = vmatprep.subr.mxu0 0.0
      %1715 = vmatpush1.msra.mxu0 0.0
      %1716 = vmatprep.subr.mxu0 0.0
      %1717 = vmatpush1.msra.mxu0 0.0
      %1718 = vmatprep.subr.mxu0 0.0
      %1719 = vmatpush1.msra.mxu0 0.0
      %1720 = vmatprep.subr.mxu0 0.0
      %1721 = vmatpush1.msra.mxu0 0.0
      %1722 = vmatprep.subr.mxu0 0.0
      %1723 = vmatpush1.msra.mxu0 0.0
      %1724 = vmatprep.subr.mxu0 0.0
      %1725 = vmatpush1.msra.mxu0 0.0
      %1726 = vmatprep.subr.mxu0 0.0
      %1727 = vmatpush1.msra.mxu0 0.0
      %1728 = vmatprep.subr.mxu0 0.0
      %1729 = vmatpush1.msra.mxu0 0.0
      %1730 = vmatprep.subr.mxu0 0.0
      %1731 = vmatpush1.msra.mxu0 0.0
      %1732 = vmatprep.subr.mxu0 0.0
      %1733 = vmatpush1.msra.mxu0 0.0
      %1734 = vmatprep.subr.mxu0 0.0
      %1735 = vmatpush1.msra.mxu0 0.0
      %1736 = vmatprep.subr.mxu0 0.0
      %1737 = vmatpush1.msra.mxu0 0.0
      %1738 = vmatprep.subr.mxu0 0.0
      %1739 = vmatpush1.msra.mxu0 0.0
      %1740 = vmatprep.subr.mxu0 0.0
      %1741 = vmatpush1.msra.mxu0 0.0
      %1742 = vmatprep.subr.mxu0 0.0
      %1743 = vmatpush1.msra.mxu0 0.0
      %1744 = vmatprep.subr.mxu0 0.0
      %1745 = vmatpush1.msra.mxu0 0.0
      %1746 = vmatprep.subr.mxu0 0.0
      %1747 = vmatpush1.msra.mxu0 0.0
      %1748 = vmatprep.subr.mxu0 0.0
      %1749 = vmatpush1.msra.mxu0 0.0
      %1750 = vmatprep.mubr.f32.mxu0 0.0
      %1751 = vmatmul.mubr.f32.gmra.mrb[0].mxu0 %v103
      %v1752 = vpop.f32.mrb[0].mxu0
      %v1753 = vadd.f32 %v48, %v1752
      %v1754 = vpop.f32.mrb[0].mxu0
      %v1755 = vadd.f32 %v48, %v1754
      %1756 = vmatprep.mubr.f32.mxu0 0.0
      %1757 = vmatmul.mubr.f32.gmra.mrb[0].mxu0 %v106
      %v1758 = vpop.f32.mrb[0].mxu0
      %v1759 = vadd.f32 %v53, %v1758
      %v1760 = vpop.f32.mrb[0].mxu0
      %v1761 = vadd.f32 %v53, %v1760
      %1762 = vmatprep.mubr.f32.mxu0 0.0
      %1763 = vmatmul.mubr.f32.gmra.mrb[0].mxu0 %v109
      %v1764 = vpop.f32.mrb[0].mxu0
      %v1765 = vadd.f32 %v58, %v1764
      %v1766 = vpop.f32.mrb[0].mxu0
      %v1767 = vadd.f32 %v58, %v1766
      %1768 = vmatprep.mubr.f32.mxu0 0.0
      %1769 = vmatmul.mubr.f32.gmra.mrb[0].mxu0 %v112
      %v1770 = vpop.f32.mrb[0].mxu0
      %v1771 = vadd.f32 %v63, %v1770
      %v1772 = vpop.f32.mrb[0].mxu0
      %v1773 = vadd.f32 %v63, %v1772
      %1774 = vmatprep.mubr.f32.mxu0 0.0
      %1775 = vmatmul.mubr.f32.gmra.mrb[0].mxu0 %v115
      %v1776 = vpop.f32.mrb[0].mxu0
      %v1777 = vadd.f32 %v68, %v1776
      %v1778 = vpop.f32.mrb[0].mxu0
      %v1779 = vadd.f32 %v68, %v1778
      %1780 = vmatprep.mubr.f32.mxu0 0.0
      %1781 = vmatmul.mubr.f32.gmra.mrb[0].mxu0 %v118
      %v1782 = vpop.f32.mrb[0].mxu0
      %v1783 = vadd.f32 %v73, %v1782
      %v1784 = vpop.f32.mrb[0].mxu0
      %v1785 = vadd.f32 %v73, %v1784
      %1786 = vmatprep.mubr.f32.mxu0 0.0
      %1787 = vmatmul.mubr.f32.gmra.mrb[0].mxu0 %v121
      %v1788 = vpop.f32.mrb[0].mxu0
      %v1789 = vadd.f32 %v78, %v1788
      %v1790 = vpop.f32.mrb[0].mxu0
      %v1791 = vadd.f32 %v78, %v1790
      %1792 = vmatprep.mubr.f32.mxu0 0.0
      %1793 = vmatmul.mubr.f32.gmra.mrb[0].mxu0 %v124
      %v1794 = vpop.f32.mrb[0].mxu0
      %v1795 = vadd.f32 %v83, %v1794
      %v1796 = vpop.f32.mrb[0].mxu0
      %v1797 = vadd.f32 %v83, %v1796
      %1798 = vdwg.mxu0
      %1799 = vmatprep.subr.mxu0 %v1684
      %1800 = vmatpush1.msra.mxu0 %v1682
      %1801 = vmatprep.subr.mxu0 0.0
      %1802 = vmatpush1.msra.mxu0 0.0
      %1803 = vmatprep.subr.mxu0 0.0
      %1804 = vmatpush1.msra.mxu0 0.0
      %1805 = vmatprep.subr.mxu0 0.0
      %1806 = vmatpush1.msra.mxu0 0.0
      %1807 = vmatprep.subr.mxu0 0.0
      %1808 = vmatpush1.msra.mxu0 0.0
      %1809 = vmatprep.subr.mxu0 0.0
      %1810 = vmatpush1.msra.mxu0 0.0
      %1811 = vmatprep.subr.mxu0 0.0
      %1812 = vmatpush1.msra.mxu0 0.0
      %1813 = vmatprep.subr.mxu0 0.0
      %1814 = vmatpush1.msra.mxu0 0.0
      %1815 = vmatprep.subr.mxu0 0.0
      %1816 = vmatpush1.msra.mxu0 0.0
      %1817 = vmatprep.subr.mxu0 0.0
      %1818 = vmatpush1.msra.mxu0 0.0
      %1819 = vmatprep.subr.mxu0 0.0
      %1820 = vmatpush1.msra.mxu0 0.0
      %1821 = vmatprep.subr.mxu0 0.0
      %1822 = vmatpush1.msra.mxu0 0.0
      %1823 = vmatprep.subr.mxu0 0.0
      %1824 = vmatpush1.msra.mxu0 0.0
      %1825 = vmatprep.subr.mxu0 0.0
      %1826 = vmatpush1.msra.mxu0 0.0
      %1827 = vmatprep.subr.mxu0 0.0
      %1828 = vmatpush1.msra.mxu0 0.0
      %1829 = vmatprep.subr.mxu0 0.0
      %1830 = vmatpush1.msra.mxu0 0.0
      %1831 = vmatprep.subr.mxu0 0.0
      %1832 = vmatpush1.msra.mxu0 0.0
      %1833 = vmatprep.subr.mxu0 0.0
      %1834 = vmatpush1.msra.mxu0 0.0
      %1835 = vmatprep.subr.mxu0 0.0
      %1836 = vmatpush1.msra.mxu0 0.0
      %1837 = vmatprep.subr.mxu0 0.0
      %1838 = vmatpush1.msra.mxu0 0.0
      %1839 = vmatprep.subr.mxu0 0.0
      %1840 = vmatpush1.msra.mxu0 0.0
      %1841 = vmatprep.subr.mxu0 0.0
      %1842 = vmatpush1.msra.mxu0 0.0
      %1843 = vmatprep.subr.mxu0 0.0
      %1844 = vmatpush1.msra.mxu0 0.0
      %1845 = vmatprep.subr.mxu0 0.0
      %1846 = vmatpush1.msra.mxu0 0.0
      %1847 = vmatprep.subr.mxu0 0.0
      %1848 = vmatpush1.msra.mxu0 0.0
      %1849 = vmatprep.subr.mxu0 0.0
      %1850 = vmatpush1.msra.mxu0 0.0
      %1851 = vmatprep.subr.mxu0 0.0
      %1852 = vmatpush1.msra.mxu0 0.0
      %1853 = vmatprep.subr.mxu0 0.0
      %1854 = vmatpush1.msra.mxu0 0.0
      %1855 = vmatprep.subr.mxu0 0.0
      %1856 = vmatpush1.msra.mxu0 0.0
      %1857 = vmatprep.subr.mxu0 0.0
      %1858 = vmatpush1.msra.mxu0 0.0
      %1859 = vmatprep.subr.mxu0 0.0
      %1860 = vmatpush1.msra.mxu0 0.0
      %1861 = vmatprep.subr.mxu0 0.0
      %1862 = vmatpush1.msra.mxu0 0.0
      %1863 = vmatprep.mubr.f32.mxu0 0.0
      %1864 = vmatmul.mubr.f32.gmra.mrb[0].mxu0 %v103
      %v1865 = vpop.f32.mrb[0].mxu0
      %v1866 = vadd.f32 %v48, %v1865
      %v1867 = vpop.f32.mrb[0].mxu0
      %v1868 = vadd.f32 %v48, %v1867
      %1869 = vmatprep.mubr.f32.mxu0 0.0
      %1870 = vmatmul.mubr.f32.gmra.mrb[0].mxu0 %v106
      %v1871 = vpop.f32.mrb[0].mxu0
      %v1872 = vadd.f32 %v53, %v1871
      %v1873 = vpop.f32.mrb[0].mxu0
      %v1874 = vadd.f32 %v53, %v1873
      %1875 = vmatprep.mubr.f32.mxu0 0.0
      %1876 = vmatmul.mubr.f32.gmra.mrb[0].mxu0 %v109
      %v1877 = vpop.f32.mrb[0].mxu0
      %v1878 = vadd.f32 %v58, %v1877
      %v1879 = vpop.f32.mrb[0].mxu0
      %v1880 = vadd.f32 %v58, %v1879
      %1881 = vmatprep.mubr.f32.mxu0 0.0
      %1882 = vmatmul.mubr.f32.gmra.mrb[0].mxu0 %v112
      %v1883 = vpop.f32.mrb[0].mxu0
      %v1884 = vadd.f32 %v63, %v1883
      %v1885 = vpop.f32.mrb[0].mxu0
      %v1886 = vadd.f32 %v63, %v1885
      %1887 = vmatprep.mubr.f32.mxu0 0.0
      %1888 = vmatmul.mubr.f32.gmra.mrb[0].mxu0 %v115
      %v1889 = vpop.f32.mrb[0].mxu0
      %v1890 = vadd.f32 %v68, %v1889
      %v1891 = vpop.f32.mrb[0].mxu0
      %v1892 = vadd.f32 %v68, %v1891
      %1893 = vmatprep.mubr.f32.mxu0 0.0
      %1894 = vmatmul.mubr.f32.gmra.mrb[0].mxu0 %v118
      %v1895 = vpop.f32.mrb[0].mxu0
      %v1896 = vadd.f32 %v73, %v1895
      %v1897 = vpop.f32.mrb[0].mxu0
      %v1898 = vadd.f32 %v73, %v1897
      %1899 = vmatprep.mubr.f32.mxu0 0.0
      %1900 = vmatmul.mubr.f32.gmra.mrb[0].mxu0 %v121
      %v1901 = vpop.f32.mrb[0].mxu0
      %v1902 = vadd.f32 %v78, %v1901
      %v1903 = vpop.f32.mrb[0].mxu0
      %v1904 = vadd.f32 %v78, %v1903
      %1905 = vmatprep.mubr.f32.mxu0 0.0
      %1906 = vmatmul.mubr.f32.gmra.mrb[0].mxu0 %v124
      %v1907 = vpop.f32.mrb[0].mxu0
      %v1908 = vadd.f32 %v83, %v1907
      %v1909 = vpop.f32.mrb[0].mxu0
      %v1910 = vadd.f32 %v83, %v1909
      %1911 = vdwg.mxu0
      %v1912 = vtanh.pop %v1753
      %v1913 = vtanh.pop %v1755
      %v1914 = vtanh.pop %v1866
      %v1915 = vtanh.pop %v1868
      %v1916 = vtanh.pop %v1759
      %v1917 = vtanh.pop %v1761
      %v1918 = vtanh.pop %v1872
      %v1919 = vtanh.pop %v1874
      %v1920 = vtanh.pop %v1765
      %v1921 = vtanh.pop %v1767
      %v1922 = vtanh.pop %v1878
      %v1923 = vtanh.pop %v1880
      %v1924 = vtanh.pop %v1771
      %v1925 = vtanh.pop %v1773
      %v1926 = vtanh.pop %v1884
      %v1927 = vtanh.pop %v1886
      %v1928 = vtanh.pop %v1777
      %v1929 = vtanh.pop %v1779
      %v1930 = vtanh.pop %v1890
      %v1931 = vtanh.pop %v1892
      %v1932 = vtanh.pop %v1783
      %v1933 = vtanh.pop %v1785
      %v1934 = vtanh.pop %v1896
      %v1935 = vtanh.pop %v1898
      %v1936 = vtanh.pop %v1789
      %v1937 = vtanh.pop %v1791
      %v1938 = vtanh.pop %v1902
      %v1939 = vtanh.pop %v1904
      %v1940 = vtanh.pop %v1795
      %v1941 = vtanh.pop %v1797
      %v1942 = vtanh.pop %v1908
      %v1943 = vtanh.pop %v1910
      %s1944 = sadd.s32 20, %s393
      %s1945 = smul.addr %s1944, 8
      %s1946 = scalar_lea.vmem [#allocation5], %s1945
      %1947 = vst [vmem:[%s1946] sm:$0xff] %v1912
      %1948 = vst [vmem:[%s1946 + $0x8] sm:$0xff] %v1913
      %1949 = vst [vmem:[%s1946 + $0x10] sm:$0xff] %v1914
      %1950 = vst [vmem:[%s1946 + $0x18] sm:$0xff] %v1915
      %1951 = vst [vmem:[%s1946 + $0x100] sm:$0xff] %v1916
      %1952 = vst [vmem:[%s1946 + $0x108] sm:$0xff] %v1917
      %1953 = vst [vmem:[%s1946 + $0x110] sm:$0xff] %v1918
      %1954 = vst [vmem:[%s1946 + $0x118] sm:$0xff] %v1919
      %1955 = vst [vmem:[%s1946 + $0x200] sm:$0xff] %v1920
      %1956 = vst [vmem:[%s1946 + $0x208] sm:$0xff] %v1921
      %1957 = vst [vmem:[%s1946 + $0x210] sm:$0xff] %v1922
      %1958 = vst [vmem:[%s1946 + $0x218] sm:$0xff] %v1923
      %1959 = vst [vmem:[%s1946 + $0x300] sm:$0xff] %v1924
      %1960 = vst [vmem:[%s1946 + $0x308] sm:$0xff] %v1925
      %1961 = vst [vmem:[%s1946 + $0x310] sm:$0xff] %v1926
      %1962 = vst [vmem:[%s1946 + $0x318] sm:$0xff] %v1927
      %1963 = vst [vmem:[%s1946 + $0x400] sm:$0xff] %v1928
      %1964 = vst [vmem:[%s1946 + $0x408] sm:$0xff] %v1929
      %1965 = vst [vmem:[%s1946 + $0x410] sm:$0xff] %v1930
      %1966 = vst [vmem:[%s1946 + $0x418] sm:$0xff] %v1931
      %1967 = vst [vmem:[%s1946 + $0x500] sm:$0xff] %v1932
      %1968 = vst [vmem:[%s1946 + $0x508] sm:$0xff] %v1933
      %1969 = vst [vmem:[%s1946 + $0x510] sm:$0xff] %v1934
      %1970 = vst [vmem:[%s1946 + $0x518] sm:$0xff] %v1935
      %1971 = vst [vmem:[%s1946 + $0x600] sm:$0xff] %v1936
      %1972 = vst [vmem:[%s1946 + $0x608] sm:$0xff] %v1937
      %1973 = vst [vmem:[%s1946 + $0x610] sm:$0xff] %v1938
      %1974 = vst [vmem:[%s1946 + $0x618] sm:$0xff] %v1939
      %1975 = vst [vmem:[%s1946 + $0x700] sm:$0xff] %v1940
      %1976 = vst [vmem:[%s1946 + $0x708] sm:$0xff] %v1941
      %1977 = vst [vmem:[%s1946 + $0x710] sm:$0xff] %v1942
      %1978 = vst [vmem:[%s1946 + $0x718] sm:$0xff] %v1943
      %s1979 = sadd.s32 24, %s91
      %s1980 = smul.addr %s1979, 4
      %s1981 = scalar_lea.vmem [#allocation2], %s1980
      %v1982 = vld [vmem:[%s1981] sm:$0xff]
      %v1983 = vld [vmem:[%s1981 + $0x8] sm:$0xff]
      %v1986 = vcombine.high %v1982, %v1982
      %v1987 = vcombine.high %v1983, %v1983
      %v1988 = vsel %vm126, %v1982, 0
      %v1990 = vsel %vm126, %v1986, 0
      %v1992 = vsel %vm126, %v1983, 0
      %v1994 = vsel %vm126, %v1987, 0
      %1996 = vmatprep.subr.mxu0 %v1990
      %1997 = vmatpush1.msra.mxu0 %v1988
      %1998 = vmatprep.subr.mxu0 0.0
      %1999 = vmatpush1.msra.mxu0 0.0
      %2000 = vmatprep.subr.mxu0 0.0
      %2001 = vmatpush1.msra.mxu0 0.0
      %2002 = vmatprep.subr.mxu0 0.0
      %2003 = vmatpush1.msra.mxu0 0.0
      %2004 = vmatprep.subr.mxu0 0.0
      %2005 = vmatpush1.msra.mxu0 0.0
      %2006 = vmatprep.subr.mxu0 0.0
      %2007 = vmatpush1.msra.mxu0 0.0
      %2008 = vmatprep.subr.mxu0 0.0
      %2009 = vmatpush1.msra.mxu0 0.0
      %2010 = vmatprep.subr.mxu0 0.0
      %2011 = vmatpush1.msra.mxu0 0.0
      %2012 = vmatprep.subr.mxu0 0.0
      %2013 = vmatpush1.msra.mxu0 0.0
      %2014 = vmatprep.subr.mxu0 0.0
      %2015 = vmatpush1.msra.mxu0 0.0
      %2016 = vmatprep.subr.mxu0 0.0
      %2017 = vmatpush1.msra.mxu0 0.0
      %2018 = vmatprep.subr.mxu0 0.0
      %2019 = vmatpush1.msra.mxu0 0.0
      %2020 = vmatprep.subr.mxu0 0.0
      %2021 = vmatpush1.msra.mxu0 0.0
      %2022 = vmatprep.subr.mxu0 0.0
      %2023 = vmatpush1.msra.mxu0 0.0
      %2024 = vmatprep.subr.mxu0 0.0
      %2025 = vmatpush1.msra.mxu0 0.0
      %2026 = vmatprep.subr.mxu0 0.0
      %2027 = vmatpush1.msra.mxu0 0.0
      %2028 = vmatprep.subr.mxu0 0.0
      %2029 = vmatpush1.msra.mxu0 0.0
      %2030 = vmatprep.subr.mxu0 0.0
      %2031 = vmatpush1.msra.mxu0 0.0
      %2032 = vmatprep.subr.mxu0 0.0
      %2033 = vmatpush1.msra.mxu0 0.0
      %2034 = vmatprep.subr.mxu0 0.0
      %2035 = vmatpush1.msra.mxu0 0.0
      %2036 = vmatprep.subr.mxu0 0.0
      %2037 = vmatpush1.msra.mxu0 0.0
      %2038 = vmatprep.subr.mxu0 0.0
      %2039 = vmatpush1.msra.mxu0 0.0
      %2040 = vmatprep.subr.mxu0 0.0
      %2041 = vmatpush1.msra.mxu0 0.0
      %2042 = vmatprep.subr.mxu0 0.0
      %2043 = vmatpush1.msra.mxu0 0.0
      %2044 = vmatprep.subr.mxu0 0.0
      %2045 = vmatpush1.msra.mxu0 0.0
      %2046 = vmatprep.subr.mxu0 0.0
      %2047 = vmatpush1.msra.mxu0 0.0
      %2048 = vmatprep.subr.mxu0 0.0
      %2049 = vmatpush1.msra.mxu0 0.0
      %2050 = vmatprep.subr.mxu0 0.0
      %2051 = vmatpush1.msra.mxu0 0.0
      %2052 = vmatprep.subr.mxu0 0.0
      %2053 = vmatpush1.msra.mxu0 0.0
      %2054 = vmatprep.subr.mxu0 0.0
      %2055 = vmatpush1.msra.mxu0 0.0
      %2056 = vmatprep.subr.mxu0 0.0
      %2057 = vmatpush1.msra.mxu0 0.0
      %2058 = vmatprep.subr.mxu0 0.0
      %2059 = vmatpush1.msra.mxu0 0.0
      %2060 = vmatprep.mubr.f32.mxu0 0.0
      %2061 = vmatmul.mubr.f32.gmra.mrb[0].mxu0 %v103
      %v2062 = vpop.f32.mrb[0].mxu0
      %v2063 = vadd.f32 %v48, %v2062
      %v2064 = vpop.f32.mrb[0].mxu0
      %v2065 = vadd.f32 %v48, %v2064
      %2066 = vmatprep.mubr.f32.mxu0 0.0
      %2067 = vmatmul.mubr.f32.gmra.mrb[0].mxu0 %v106
      %v2068 = vpop.f32.mrb[0].mxu0
      %v2069 = vadd.f32 %v53, %v2068
      %v2070 = vpop.f32.mrb[0].mxu0
      %v2071 = vadd.f32 %v53, %v2070
      %2072 = vmatprep.mubr.f32.mxu0 0.0
      %2073 = vmatmul.mubr.f32.gmra.mrb[0].mxu0 %v109
      %v2074 = vpop.f32.mrb[0].mxu0
      %v2075 = vadd.f32 %v58, %v2074
      %v2076 = vpop.f32.mrb[0].mxu0
      %v2077 = vadd.f32 %v58, %v2076
      %2078 = vmatprep.mubr.f32.mxu0 0.0
      %2079 = vmatmul.mubr.f32.gmra.mrb[0].mxu0 %v112
      %v2080 = vpop.f32.mrb[0].mxu0
      %v2081 = vadd.f32 %v63, %v2080
      %v2082 = vpop.f32.mrb[0].mxu0
      %v2083 = vadd.f32 %v63, %v2082
      %2084 = vmatprep.mubr.f32.mxu0 0.0
      %2085 = vmatmul.mubr.f32.gmra.mrb[0].mxu0 %v115
      %v2086 = vpop.f32.mrb[0].mxu0
      %v2087 = vadd.f32 %v68, %v2086
      %v2088 = vpop.f32.mrb[0].mxu0
      %v2089 = vadd.f32 %v68, %v2088
      %2090 = vmatprep.mubr.f32.mxu0 0.0
      %2091 = vmatmul.mubr.f32.gmra.mrb[0].mxu0 %v118
      %v2092 = vpop.f32.mrb[0].mxu0
      %v2093 = vadd.f32 %v73, %v2092
      %v2094 = vpop.f32.mrb[0].mxu0
      %v2095 = vadd.f32 %v73, %v2094
      %2096 = vmatprep.mubr.f32.mxu0 0.0
      %2097 = vmatmul.mubr.f32.gmra.mrb[0].mxu0 %v121
      %v2098 = vpop.f32.mrb[0].mxu0
      %v2099 = vadd.f32 %v78, %v2098
      %v2100 = vpop.f32.mrb[0].mxu0
      %v2101 = vadd.f32 %v78, %v2100
      %2102 = vmatprep.mubr.f32.mxu0 0.0
      %2103 = vmatmul.mubr.f32.gmra.mrb[0].mxu0 %v124
      %v2104 = vpop.f32.mrb[0].mxu0
      %v2105 = vadd.f32 %v83, %v2104
      %v2106 = vpop.f32.mrb[0].mxu0
      %v2107 = vadd.f32 %v83, %v2106
      %2108 = vdwg.mxu0
      %2109 = vmatprep.subr.mxu0 %v1994
      %2110 = vmatpush1.msra.mxu0 %v1992
      %2111 = vmatprep.subr.mxu0 0.0
      %2112 = vmatpush1.msra.mxu0 0.0
      %2113 = vmatprep.subr.mxu0 0.0
      %2114 = vmatpush1.msra.mxu0 0.0
      %2115 = vmatprep.subr.mxu0 0.0
      %2116 = vmatpush1.msra.mxu0 0.0
      %2117 = vmatprep.subr.mxu0 0.0
      %2118 = vmatpush1.msra.mxu0 0.0
      %2119 = vmatprep.subr.mxu0 0.0
      %2120 = vmatpush1.msra.mxu0 0.0
      %2121 = vmatprep.subr.mxu0 0.0
      %2122 = vmatpush1.msra.mxu0 0.0
      %2123 = vmatprep.subr.mxu0 0.0
      %2124 = vmatpush1.msra.mxu0 0.0
      %2125 = vmatprep.subr.mxu0 0.0
      %2126 = vmatpush1.msra.mxu0 0.0
      %2127 = vmatprep.subr.mxu0 0.0
      %2128 = vmatpush1.msra.mxu0 0.0
      %2129 = vmatprep.subr.mxu0 0.0
      %2130 = vmatpush1.msra.mxu0 0.0
      %2131 = vmatprep.subr.mxu0 0.0
      %2132 = vmatpush1.msra.mxu0 0.0
      %2133 = vmatprep.subr.mxu0 0.0
      %2134 = vmatpush1.msra.mxu0 0.0
      %2135 = vmatprep.subr.mxu0 0.0
      %2136 = vmatpush1.msra.mxu0 0.0
      %2137 = vmatprep.subr.mxu0 0.0
      %2138 = vmatpush1.msra.mxu0 0.0
      %2139 = vmatprep.subr.mxu0 0.0
      %2140 = vmatpush1.msra.mxu0 0.0
      %2141 = vmatprep.subr.mxu0 0.0
      %2142 = vmatpush1.msra.mxu0 0.0
      %2143 = vmatprep.subr.mxu0 0.0
      %2144 = vmatpush1.msra.mxu0 0.0
      %2145 = vmatprep.subr.mxu0 0.0
      %2146 = vmatpush1.msra.mxu0 0.0
      %2147 = vmatprep.subr.mxu0 0.0
      %2148 = vmatpush1.msra.mxu0 0.0
      %2149 = vmatprep.subr.mxu0 0.0
      %2150 = vmatpush1.msra.mxu0 0.0
      %2151 = vmatprep.subr.mxu0 0.0
      %2152 = vmatpush1.msra.mxu0 0.0
      %2153 = vmatprep.subr.mxu0 0.0
      %2154 = vmatpush1.msra.mxu0 0.0
      %2155 = vmatprep.subr.mxu0 0.0
      %2156 = vmatpush1.msra.mxu0 0.0
      %2157 = vmatprep.subr.mxu0 0.0
      %2158 = vmatpush1.msra.mxu0 0.0
      %2159 = vmatprep.subr.mxu0 0.0
      %2160 = vmatpush1.msra.mxu0 0.0
      %2161 = vmatprep.subr.mxu0 0.0
      %2162 = vmatpush1.msra.mxu0 0.0
      %2163 = vmatprep.subr.mxu0 0.0
      %2164 = vmatpush1.msra.mxu0 0.0
      %2165 = vmatprep.subr.mxu0 0.0
      %2166 = vmatpush1.msra.mxu0 0.0
      %2167 = vmatprep.subr.mxu0 0.0
      %2168 = vmatpush1.msra.mxu0 0.0
      %2169 = vmatprep.subr.mxu0 0.0
      %2170 = vmatpush1.msra.mxu0 0.0
      %2171 = vmatprep.subr.mxu0 0.0
      %2172 = vmatpush1.msra.mxu0 0.0
      %2173 = vmatprep.mubr.f32.mxu0 0.0
      %2174 = vmatmul.mubr.f32.gmra.mrb[0].mxu0 %v103
      %v2175 = vpop.f32.mrb[0].mxu0
      %v2176 = vadd.f32 %v48, %v2175
      %v2177 = vpop.f32.mrb[0].mxu0
      %v2178 = vadd.f32 %v48, %v2177
      %2179 = vmatprep.mubr.f32.mxu0 0.0
      %2180 = vmatmul.mubr.f32.gmra.mrb[0].mxu0 %v106
      %v2181 = vpop.f32.mrb[0].mxu0
      %v2182 = vadd.f32 %v53, %v2181
      %v2183 = vpop.f32.mrb[0].mxu0
      %v2184 = vadd.f32 %v53, %v2183
      %2185 = vmatprep.mubr.f32.mxu0 0.0
      %2186 = vmatmul.mubr.f32.gmra.mrb[0].mxu0 %v109
      %v2187 = vpop.f32.mrb[0].mxu0
      %v2188 = vadd.f32 %v58, %v2187
      %v2189 = vpop.f32.mrb[0].mxu0
      %v2190 = vadd.f32 %v58, %v2189
      %2191 = vmatprep.mubr.f32.mxu0 0.0
      %2192 = vmatmul.mubr.f32.gmra.mrb[0].mxu0 %v112
      %v2193 = vpop.f32.mrb[0].mxu0
      %v2194 = vadd.f32 %v63, %v2193
      %v2195 = vpop.f32.mrb[0].mxu0
      %v2196 = vadd.f32 %v63, %v2195
      %2197 = vmatprep.mubr.f32.mxu0 0.0
      %2198 = vmatmul.mubr.f32.gmra.mrb[0].mxu0 %v115
      %v2199 = vpop.f32.mrb[0].mxu0
      %v2200 = vadd.f32 %v68, %v2199
      %v2201 = vpop.f32.mrb[0].mxu0
      %v2202 = vadd.f32 %v68, %v2201
      %2203 = vmatprep.mubr.f32.mxu0 0.0
      %2204 = vmatmul.mubr.f32.gmra.mrb[0].mxu0 %v118
      %v2205 = vpop.f32.mrb[0].mxu0
      %v2206 = vadd.f32 %v73, %v2205
      %v2207 = vpop.f32.mrb[0].mxu0
      %v2208 = vadd.f32 %v73, %v2207
      %2209 = vmatprep.mubr.f32.mxu0 0.0
      %2210 = vmatmul.mubr.f32.gmra.mrb[0].mxu0 %v121
      %v2211 = vpop.f32.mrb[0].mxu0
      %v2212 = vadd.f32 %v78, %v2211
      %v2213 = vpop.f32.mrb[0].mxu0
      %v2214 = vadd.f32 %v78, %v2213
      %2215 = vmatprep.mubr.f32.mxu0 0.0
      %2216 = vmatmul.mubr.f32.gmra.mrb[0].mxu0 %v124
      %v2217 = vpop.f32.mrb[0].mxu0
      %v2218 = vadd.f32 %v83, %v2217
      %v2219 = vpop.f32.mrb[0].mxu0
      %v2220 = vadd.f32 %v83, %v2219
      %2221 = vdwg.mxu0
      %v2222 = vtanh.pop %v2063
      %v2223 = vtanh.pop %v2065
      %v2224 = vtanh.pop %v2176
      %v2225 = vtanh.pop %v2178
      %v2226 = vtanh.pop %v2069
      %v2227 = vtanh.pop %v2071
      %v2228 = vtanh.pop %v2182
      %v2229 = vtanh.pop %v2184
      %v2230 = vtanh.pop %v2075
      %v2231 = vtanh.pop %v2077
      %v2232 = vtanh.pop %v2188
      %v2233 = vtanh.pop %v2190
      %v2234 = vtanh.pop %v2081
      %v2235 = vtanh.pop %v2083
      %v2236 = vtanh.pop %v2194
      %v2237 = vtanh.pop %v2196
      %v2238 = vtanh.pop %v2087
      %v2239 = vtanh.pop %v2089
      %v2240 = vtanh.pop %v2200
      %v2241 = vtanh.pop %v2202
      %v2242 = vtanh.pop %v2093
      %v2243 = vtanh.pop %v2095
      %v2244 = vtanh.pop %v2206
      %v2245 = vtanh.pop %v2208
      %v2246 = vtanh.pop %v2099
      %v2247 = vtanh.pop %v2101
      %v2248 = vtanh.pop %v2212
      %v2249 = vtanh.pop %v2214
      %v2250 = vtanh.pop %v2105
      %v2251 = vtanh.pop %v2107
      %v2252 = vtanh.pop %v2218
      %v2253 = vtanh.pop %v2220
      %s2254 = sadd.s32 24, %s393
      %s2255 = smul.addr %s2254, 8
      %s2256 = scalar_lea.vmem [#allocation5], %s2255
      %2257 = vst [vmem:[%s2256] sm:$0xff] %v2222
      %2258 = vst [vmem:[%s2256 + $0x8] sm:$0xff] %v2223
      %2259 = vst [vmem:[%s2256 + $0x10] sm:$0xff] %v2224
      %2260 = vst [vmem:[%s2256 + $0x18] sm:$0xff] %v2225
      %2261 = vst [vmem:[%s2256 + $0x100] sm:$0xff] %v2226
      %2262 = vst [vmem:[%s2256 + $0x108] sm:$0xff] %v2227
      %2263 = vst [vmem:[%s2256 + $0x110] sm:$0xff] %v2228
      %2264 = vst [vmem:[%s2256 + $0x118] sm:$0xff] %v2229
      %2265 = vst [vmem:[%s2256 + $0x200] sm:$0xff] %v2230
      %2266 = vst [vmem:[%s2256 + $0x208] sm:$0xff] %v2231
      %2267 = vst [vmem:[%s2256 + $0x210] sm:$0xff] %v2232
      %2268 = vst [vmem:[%s2256 + $0x218] sm:$0xff] %v2233
      %2269 = vst [vmem:[%s2256 + $0x300] sm:$0xff] %v2234
      %2270 = vst [vmem:[%s2256 + $0x308] sm:$0xff] %v2235
      %2271 = vst [vmem:[%s2256 + $0x310] sm:$0xff] %v2236
      %2272 = vst [vmem:[%s2256 + $0x318] sm:$0xff] %v2237
      %2273 = vst [vmem:[%s2256 + $0x400] sm:$0xff] %v2238
      %2274 = vst [vmem:[%s2256 + $0x408] sm:$0xff] %v2239
      %2275 = vst [vmem:[%s2256 + $0x410] sm:$0xff] %v2240
      %2276 = vst [vmem:[%s2256 + $0x418] sm:$0xff] %v2241
      %2277 = vst [vmem:[%s2256 + $0x500] sm:$0xff] %v2242
      %2278 = vst [vmem:[%s2256 + $0x508] sm:$0xff] %v2243
      %2279 = vst [vmem:[%s2256 + $0x510] sm:$0xff] %v2244
      %2280 = vst [vmem:[%s2256 + $0x518] sm:$0xff] %v2245
      %2281 = vst [vmem:[%s2256 + $0x600] sm:$0xff] %v2246
      %2282 = vst [vmem:[%s2256 + $0x608] sm:$0xff] %v2247
      %2283 = vst [vmem:[%s2256 + $0x610] sm:$0xff] %v2248
      %2284 = vst [vmem:[%s2256 + $0x618] sm:$0xff] %v2249
      %2285 = vst [vmem:[%s2256 + $0x700] sm:$0xff] %v2250
      %2286 = vst [vmem:[%s2256 + $0x708] sm:$0xff] %v2251
      %2287 = vst [vmem:[%s2256 + $0x710] sm:$0xff] %v2252
      %2288 = vst [vmem:[%s2256 + $0x718] sm:$0xff] %v2253
      %s2289 = sadd.s32 28, %s91
      %s2290 = smul.addr %s2289, 4
      %s2291 = scalar_lea.vmem [#allocation2], %s2290
      %v2292 = vld [vmem:[%s2291] sm:$0xff]
      %v2293 = vld [vmem:[%s2291 + $0x8] sm:$0xff]
      %v2296 = vcombine.high %v2292, %v2292
      %v2297 = vcombine.high %v2293, %v2293
      %v2298 = vsel %vm126, %v2292, 0
      %v2300 = vsel %vm126, %v2296, 0
      %v2302 = vsel %vm126, %v2293, 0
      %v2304 = vsel %vm126, %v2297, 0
      %2306 = vmatprep.subr.mxu0 %v2300
      %2307 = vmatpush1.msra.mxu0 %v2298
      %2308 = vmatprep.subr.mxu0 0.0
      %2309 = vmatpush1.msra.mxu0 0.0
      %2310 = vmatprep.subr.mxu0 0.0
      %2311 = vmatpush1.msra.mxu0 0.0
      %2312 = vmatprep.subr.mxu0 0.0
      %2313 = vmatpush1.msra.mxu0 0.0
      %2314 = vmatprep.subr.mxu0 0.0
      %2315 = vmatpush1.msra.mxu0 0.0
      %2316 = vmatprep.subr.mxu0 0.0
      %2317 = vmatpush1.msra.mxu0 0.0
      %2318 = vmatprep.subr.mxu0 0.0
      %2319 = vmatpush1.msra.mxu0 0.0
      %2320 = vmatprep.subr.mxu0 0.0
      %2321 = vmatpush1.msra.mxu0 0.0
      %2322 = vmatprep.subr.mxu0 0.0
      %2323 = vmatpush1.msra.mxu0 0.0
      %2324 = vmatprep.subr.mxu0 0.0
      %2325 = vmatpush1.msra.mxu0 0.0
      %2326 = vmatprep.subr.mxu0 0.0
      %2327 = vmatpush1.msra.mxu0 0.0
      %2328 = vmatprep.subr.mxu0 0.0
      %2329 = vmatpush1.msra.mxu0 0.0
      %2330 = vmatprep.subr.mxu0 0.0
      %2331 = vmatpush1.msra.mxu0 0.0
      %2332 = vmatprep.subr.mxu0 0.0
      %2333 = vmatpush1.msra.mxu0 0.0
      %2334 = vmatprep.subr.mxu0 0.0
      %2335 = vmatpush1.msra.mxu0 0.0
      %2336 = vmatprep.subr.mxu0 0.0
      %2337 = vmatpush1.msra.mxu0 0.0
      %2338 = vmatprep.subr.mxu0 0.0
      %2339 = vmatpush1.msra.mxu0 0.0
      %2340 = vmatprep.subr.mxu0 0.0
      %2341 = vmatpush1.msra.mxu0 0.0
      %2342 = vmatprep.subr.mxu0 0.0
      %2343 = vmatpush1.msra.mxu0 0.0
      %2344 = vmatprep.subr.mxu0 0.0
      %2345 = vmatpush1.msra.mxu0 0.0
      %2346 = vmatprep.subr.mxu0 0.0
      %2347 = vmatpush1.msra.mxu0 0.0
      %2348 = vmatprep.subr.mxu0 0.0
      %2349 = vmatpush1.msra.mxu0 0.0
      %2350 = vmatprep.subr.mxu0 0.0
      %2351 = vmatpush1.msra.mxu0 0.0
      %2352 = vmatprep.subr.mxu0 0.0
      %2353 = vmatpush1.msra.mxu0 0.0
      %2354 = vmatprep.subr.mxu0 0.0
      %2355 = vmatpush1.msra.mxu0 0.0
      %2356 = vmatprep.subr.mxu0 0.0
      %2357 = vmatpush1.msra.mxu0 0.0
      %2358 = vmatprep.subr.mxu0 0.0
      %2359 = vmatpush1.msra.mxu0 0.0
      %2360 = vmatprep.subr.mxu0 0.0
      %2361 = vmatpush1.msra.mxu0 0.0
      %2362 = vmatprep.subr.mxu0 0.0
      %2363 = vmatpush1.msra.mxu0 0.0
      %2364 = vmatprep.subr.mxu0 0.0
      %2365 = vmatpush1.msra.mxu0 0.0
      %2366 = vmatprep.subr.mxu0 0.0
      %2367 = vmatpush1.msra.mxu0 0.0
      %2368 = vmatprep.subr.mxu0 0.0
      %2369 = vmatpush1.msra.mxu0 0.0
      %2370 = vmatprep.mubr.f32.mxu0 0.0
      %2371 = vmatmul.mubr.f32.gmra.mrb[0].mxu0 %v103
      %v2372 = vpop.f32.mrb[0].mxu0
      %v2373 = vadd.f32 %v48, %v2372
      %v2374 = vpop.f32.mrb[0].mxu0
      %v2375 = vadd.f32 %v48, %v2374
      %2376 = vmatprep.mubr.f32.mxu0 0.0
      %2377 = vmatmul.mubr.f32.gmra.mrb[0].mxu0 %v106
      %v2378 = vpop.f32.mrb[0].mxu0
      %v2379 = vadd.f32 %v53, %v2378
      %v2380 = vpop.f32.mrb[0].mxu0
      %v2381 = vadd.f32 %v53, %v2380
      %2382 = vmatprep.mubr.f32.mxu0 0.0
      %2383 = vmatmul.mubr.f32.gmra.mrb[0].mxu0 %v109
      %v2384 = vpop.f32.mrb[0].mxu0
      %v2385 = vadd.f32 %v58, %v2384
      %v2386 = vpop.f32.mrb[0].mxu0
      %v2387 = vadd.f32 %v58, %v2386
      %2388 = vmatprep.mubr.f32.mxu0 0.0
      %2389 = vmatmul.mubr.f32.gmra.mrb[0].mxu0 %v112
      %v2390 = vpop.f32.mrb[0].mxu0
      %v2391 = vadd.f32 %v63, %v2390
      %v2392 = vpop.f32.mrb[0].mxu0
      %v2393 = vadd.f32 %v63, %v2392
      %2394 = vmatprep.mubr.f32.mxu0 0.0
      %2395 = vmatmul.mubr.f32.gmra.mrb[0].mxu0 %v115
      %v2396 = vpop.f32.mrb[0].mxu0
      %v2397 = vadd.f32 %v68, %v2396
      %v2398 = vpop.f32.mrb[0].mxu0
      %v2399 = vadd.f32 %v68, %v2398
      %2400 = vmatprep.mubr.f32.mxu0 0.0
      %2401 = vmatmul.mubr.f32.gmra.mrb[0].mxu0 %v118
      %v2402 = vpop.f32.mrb[0].mxu0
      %v2403 = vadd.f32 %v73, %v2402
      %v2404 = vpop.f32.mrb[0].mxu0
      %v2405 = vadd.f32 %v73, %v2404
      %2406 = vmatprep.mubr.f32.mxu0 0.0
      %2407 = vmatmul.mubr.f32.gmra.mrb[0].mxu0 %v121
      %v2408 = vpop.f32.mrb[0].mxu0
      %v2409 = vadd.f32 %v78, %v2408
      %v2410 = vpop.f32.mrb[0].mxu0
      %v2411 = vadd.f32 %v78, %v2410
      %2412 = vmatprep.mubr.f32.mxu0 0.0
      %2413 = vmatmul.mubr.f32.gmra.mrb[0].mxu0 %v124
      %v2414 = vpop.f32.mrb[0].mxu0
      %v2415 = vadd.f32 %v83, %v2414
      %v2416 = vpop.f32.mrb[0].mxu0
      %v2417 = vadd.f32 %v83, %v2416
      %2418 = vdwg.mxu0
      %2419 = vmatprep.subr.mxu0 %v2304
      %2420 = vmatpush1.msra.mxu0 %v2302
      %2421 = vmatprep.subr.mxu0 0.0
      %2422 = vmatpush1.msra.mxu0 0.0
      %2423 = vmatprep.subr.mxu0 0.0
      %2424 = vmatpush1.msra.mxu0 0.0
      %2425 = vmatprep.subr.mxu0 0.0
      %2426 = vmatpush1.msra.mxu0 0.0
      %2427 = vmatprep.subr.mxu0 0.0
      %2428 = vmatpush1.msra.mxu0 0.0
      %2429 = vmatprep.subr.mxu0 0.0
      %2430 = vmatpush1.msra.mxu0 0.0
      %2431 = vmatprep.subr.mxu0 0.0
      %2432 = vmatpush1.msra.mxu0 0.0
      %2433 = vmatprep.subr.mxu0 0.0
      %2434 = vmatpush1.msra.mxu0 0.0
      %2435 = vmatprep.subr.mxu0 0.0
      %2436 = vmatpush1.msra.mxu0 0.0
      %2437 = vmatprep.subr.mxu0 0.0
      %2438 = vmatpush1.msra.mxu0 0.0
      %2439 = vmatprep.subr.mxu0 0.0
      %2440 = vmatpush1.msra.mxu0 0.0
      %2441 = vmatprep.subr.mxu0 0.0
      %2442 = vmatpush1.msra.mxu0 0.0
      %2443 = vmatprep.subr.mxu0 0.0
      %2444 = vmatpush1.msra.mxu0 0.0
      %2445 = vmatprep.subr.mxu0 0.0
      %2446 = vmatpush1.msra.mxu0 0.0
      %2447 = vmatprep.subr.mxu0 0.0
      %2448 = vmatpush1.msra.mxu0 0.0
      %2449 = vmatprep.subr.mxu0 0.0
      %2450 = vmatpush1.msra.mxu0 0.0
      %2451 = vmatprep.subr.mxu0 0.0
      %2452 = vmatpush1.msra.mxu0 0.0
      %2453 = vmatprep.subr.mxu0 0.0
      %2454 = vmatpush1.msra.mxu0 0.0
      %2455 = vmatprep.subr.mxu0 0.0
      %2456 = vmatpush1.msra.mxu0 0.0
      %2457 = vmatprep.subr.mxu0 0.0
      %2458 = vmatpush1.msra.mxu0 0.0
      %2459 = vmatprep.subr.mxu0 0.0
      %2460 = vmatpush1.msra.mxu0 0.0
      %2461 = vmatprep.subr.mxu0 0.0
      %2462 = vmatpush1.msra.mxu0 0.0
      %2463 = vmatprep.subr.mxu0 0.0
      %2464 = vmatpush1.msra.mxu0 0.0
      %2465 = vmatprep.subr.mxu0 0.0
      %2466 = vmatpush1.msra.mxu0 0.0
      %2467 = vmatprep.subr.mxu0 0.0
      %2468 = vmatpush1.msra.mxu0 0.0
      %2469 = vmatprep.subr.mxu0 0.0
      %2470 = vmatpush1.msra.mxu0 0.0
      %2471 = vmatprep.subr.mxu0 0.0
      %2472 = vmatpush1.msra.mxu0 0.0
      %2473 = vmatprep.subr.mxu0 0.0
      %2474 = vmatpush1.msra.mxu0 0.0
      %2475 = vmatprep.subr.mxu0 0.0
      %2476 = vmatpush1.msra.mxu0 0.0
      %2477 = vmatprep.subr.mxu0 0.0
      %2478 = vmatpush1.msra.mxu0 0.0
      %2479 = vmatprep.subr.mxu0 0.0
      %2480 = vmatpush1.msra.mxu0 0.0
      %2481 = vmatprep.subr.mxu0 0.0
      %2482 = vmatpush1.msra.mxu0 0.0
      %2483 = vmatprep.mubr.f32.mxu0 0.0
      %2484 = vmatmul.mubr.f32.gmra.mrb[0].mxu0 %v103
      %v2485 = vpop.f32.mrb[0].mxu0
      %v2486 = vadd.f32 %v48, %v2485
      %v2487 = vpop.f32.mrb[0].mxu0
      %v2488 = vadd.f32 %v48, %v2487
      %2489 = vmatprep.mubr.f32.mxu0 0.0
      %2490 = vmatmul.mubr.f32.gmra.mrb[0].mxu0 %v106
      %v2491 = vpop.f32.mrb[0].mxu0
      %v2492 = vadd.f32 %v53, %v2491
      %v2493 = vpop.f32.mrb[0].mxu0
      %v2494 = vadd.f32 %v53, %v2493
      %2495 = vmatprep.mubr.f32.mxu0 0.0
      %2496 = vmatmul.mubr.f32.gmra.mrb[0].mxu0 %v109
      %v2497 = vpop.f32.mrb[0].mxu0
      %v2498 = vadd.f32 %v58, %v2497
      %v2499 = vpop.f32.mrb[0].mxu0
      %v2500 = vadd.f32 %v58, %v2499
      %2501 = vmatprep.mubr.f32.mxu0 0.0
      %2502 = vmatmul.mubr.f32.gmra.mrb[0].mxu0 %v112
      %v2503 = vpop.f32.mrb[0].mxu0
      %v2504 = vadd.f32 %v63, %v2503
      %v2505 = vpop.f32.mrb[0].mxu0
      %v2506 = vadd.f32 %v63, %v2505
      %2507 = vmatprep.mubr.f32.mxu0 0.0
      %2508 = vmatmul.mubr.f32.gmra.mrb[0].mxu0 %v115
      %v2509 = vpop.f32.mrb[0].mxu0
      %v2510 = vadd.f32 %v68, %v2509
      %v2511 = vpop.f32.mrb[0].mxu0
      %v2512 = vadd.f32 %v68, %v2511
      %2513 = vmatprep.mubr.f32.mxu0 0.0
      %2514 = vmatmul.mubr.f32.gmra.mrb[0].mxu0 %v118
      %v2515 = vpop.f32.mrb[0].mxu0
      %v2516 = vadd.f32 %v73, %v2515
      %v2517 = vpop.f32.mrb[0].mxu0
      %v2518 = vadd.f32 %v73, %v2517
      %2519 = vmatprep.mubr.f32.mxu0 0.0
      %2520 = vmatmul.mubr.f32.gmra.mrb[0].mxu0 %v121
      %v2521 = vpop.f32.mrb[0].mxu0
      %v2522 = vadd.f32 %v78, %v2521
      %v2523 = vpop.f32.mrb[0].mxu0
      %v2524 = vadd.f32 %v78, %v2523
      %2525 = vmatprep.mubr.f32.mxu0 0.0
      %2526 = vmatmul.mubr.f32.gmra.mrb[0].mxu0 %v124
      %v2527 = vpop.f32.mrb[0].mxu0
      %v2528 = vadd.f32 %v83, %v2527
      %v2529 = vpop.f32.mrb[0].mxu0
      %v2530 = vadd.f32 %v83, %v2529
      %2531 = vdwg.mxu0
      %v2532 = vtanh.pop %v2373
      %v2533 = vtanh.pop %v2375
      %v2534 = vtanh.pop %v2486
      %v2535 = vtanh.pop %v2488
      %v2536 = vtanh.pop %v2379
      %v2537 = vtanh.pop %v2381
      %v2538 = vtanh.pop %v2492
      %v2539 = vtanh.pop %v2494
      %v2540 = vtanh.pop %v2385
      %v2541 = vtanh.pop %v2387
      %v2542 = vtanh.pop %v2498
      %v2543 = vtanh.pop %v2500
      %v2544 = vtanh.pop %v2391
      %v2545 = vtanh.pop %v2393
      %v2546 = vtanh.pop %v2504
      %v2547 = vtanh.pop %v2506
      %v2548 = vtanh.pop %v2397
      %v2549 = vtanh.pop %v2399
      %v2550 = vtanh.pop %v2510
      %v2551 = vtanh.pop %v2512
      %v2552 = vtanh.pop %v2403
      %v2553 = vtanh.pop %v2405
      %v2554 = vtanh.pop %v2516
      %v2555 = vtanh.pop %v2518
      %v2556 = vtanh.pop %v2409
      %v2557 = vtanh.pop %v2411
      %v2558 = vtanh.pop %v2522
      %v2559 = vtanh.pop %v2524
      %v2560 = vtanh.pop %v2415
      %v2561 = vtanh.pop %v2417
      %v2562 = vtanh.pop %v2528
      %v2563 = vtanh.pop %v2530
      %s2564 = sadd.s32 28, %s393
      %s2565 = smul.addr %s2564, 8
      %s2566 = scalar_lea.vmem [#allocation5], %s2565
      %2567 = vst [vmem:[%s2566] sm:$0xff] %v2532
      %2568 = vst [vmem:[%s2566 + $0x8] sm:$0xff] %v2533
      %2569 = vst [vmem:[%s2566 + $0x10] sm:$0xff] %v2534
      %2570 = vst [vmem:[%s2566 + $0x18] sm:$0xff] %v2535
      %2571 = vst [vmem:[%s2566 + $0x100] sm:$0xff] %v2536
      %2572 = vst [vmem:[%s2566 + $0x108] sm:$0xff] %v2537
      %2573 = vst [vmem:[%s2566 + $0x110] sm:$0xff] %v2538
      %2574 = vst [vmem:[%s2566 + $0x118] sm:$0xff] %v2539
      %2575 = vst [vmem:[%s2566 + $0x200] sm:$0xff] %v2540
      %2576 = vst [vmem:[%s2566 + $0x208] sm:$0xff] %v2541
      %2577 = vst [vmem:[%s2566 + $0x210] sm:$0xff] %v2542
      %2578 = vst [vmem:[%s2566 + $0x218] sm:$0xff] %v2543
      %2579 = vst [vmem:[%s2566 + $0x300] sm:$0xff] %v2544
      %2580 = vst [vmem:[%s2566 + $0x308] sm:$0xff] %v2545
      %2581 = vst [vmem:[%s2566 + $0x310] sm:$0xff] %v2546
      %2582 = vst [vmem:[%s2566 + $0x318] sm:$0xff] %v2547
      %2583 = vst [vmem:[%s2566 + $0x400] sm:$0xff] %v2548
      %2584 = vst [vmem:[%s2566 + $0x408] sm:$0xff] %v2549
      %2585 = vst [vmem:[%s2566 + $0x410] sm:$0xff] %v2550
      %2586 = vst [vmem:[%s2566 + $0x418] sm:$0xff] %v2551
      %2587 = vst [vmem:[%s2566 + $0x500] sm:$0xff] %v2552
      %2588 = vst [vmem:[%s2566 + $0x508] sm:$0xff] %v2553
      %2589 = vst [vmem:[%s2566 + $0x510] sm:$0xff] %v2554
      %2590 = vst [vmem:[%s2566 + $0x518] sm:$0xff] %v2555
      %2591 = vst [vmem:[%s2566 + $0x600] sm:$0xff] %v2556
      %2592 = vst [vmem:[%s2566 + $0x608] sm:$0xff] %v2557
      %2593 = vst [vmem:[%s2566 + $0x610] sm:$0xff] %v2558
      %2594 = vst [vmem:[%s2566 + $0x618] sm:$0xff] %v2559
      %2595 = vst [vmem:[%s2566 + $0x700] sm:$0xff] %v2560
      %2596 = vst [vmem:[%s2566 + $0x708] sm:$0xff] %v2561
      %2597 = vst [vmem:[%s2566 + $0x710] sm:$0xff] %v2562
      %2598 = vst [vmem:[%s2566 + $0x718] sm:$0xff] %v2563
    $region22: #{tpu_custom_call.1} parent=1 // loop_footer
      %s90 = sadd.s32 1, %s86
    $region23: #{tpu_custom_call.1} parent=1 // loop_footer_branch
      %85 = sbr.rel target = $region19
    $region24: #{tpu_custom_call.1} parent=1 // loop_exit
      _
    // Predicated region
    $region25: #{tpu_custom_call.1} parent=1 // pred_check
      _
    $region26: #{tpu_custom_call.1} parent=1 // pred_check_branch
      %2600 = sbr.rel (0) target = $region28
    $region27: #{tpu_custom_call.1} parent=1 // pred_region
      %s2602 = ssub.s32 131072, 131072
      %2603 = vsyncadd [#allocation4], %s2602
      %s2604 = sshll.u32 [#allocation5], 4
      %s2605 = int_to_ptr.vmem [resolvable:$true] %s2604
      %2610 = dma.vmem_to_hbm [thread:$0]  %s2605, 131072, %s3, [#allocation4], 4096, 4096, 256
    $region28: #{tpu_custom_call.1} parent=1 // pred_fallthru
      _
    // Predicated region
    $region29: #{tpu_custom_call.1} parent=1 // pred_check
      _
    $region30: #{tpu_custom_call.1} parent=1 // pred_check_branch
      %2612 = sbr.rel (0) target = $region32
    $region31: #{tpu_custom_call.1} parent=1 // pred_region
      %2613 = dma.done [#allocation4], 131072
    $region32: #{tpu_custom_call.1} parent=1 // pred_fallthru
      _
    %2614 = vsyncpa [#allocation3], 1
    %2615 = vsyncpa [#allocation4], 1

</llo_original>
